<compile_context>
chip_gen: v5e
topology: v5e:2x2
jax: 0.10.0
libtpu: 0.0.40
codegen_flags: <defaults>
</compile_context>

<pallas_src>
import functools

import jax
import jax.numpy as jnp
from jax.experimental import pallas as pl
from jax.experimental.pallas import tpu as pltpu

_GL = 128  # lanes per gate block: one full vreg lane-tile per gate


def _gru_bgmm_kernel(x_ref, p_ref, out_ref, *, T, B, C, H):
    """Single invocation: hoisted MXU input projection + unrolled VPU recurrence.

    x_ref   : (B*T, C)     batch-major flattened inputs (row b*T + t)
    p_ref   : (RPAD, 3*GL) gate-aligned parameter slab (see _build_param_slab)
    out_ref : (B*T, H)     bgmm-activated GRU outputs, torch reshape order
    """
    GL = _GL
    P = p_ref[...]                                    # (RPAD, 3*GL), one load

    # Static, loop-invariant views of the parameter slab.
    wih = P[0:C, :]                                   # (C, 3*GL)  W_ih^T (gate-aligned)
    bcomb = P[C:C + 1, :]                             # (1, 3*GL)  [b_ir+b_hr | b_iz+b_hz | b_in]
    whh = P[C + 1:C + 1 + H, :]                       # (H, 3*GL)  W_hh^T (gate-aligned)
    bhn = P[C + 1 + H:C + 2 + H, 0:GL]                # (1, GL)    b_hn

    # Hoisted (non-recurrent) input projection for ALL (b, t): one MXU matmul.
    gi = jnp.dot(x_ref[...], wih,
                 preferred_element_type=jnp.float32,
                 precision=jax.lax.Precision.HIGHEST) + bcomb      # (B*T, 3*GL)

    # Per-timestep gate rows, gathered once up front (rows b*T + t).  These do
    # not depend on the recurrent state, so they sit off the serial chain.
    gi_steps = []
    for t in range(T):
        rows = [gi[b * T + t:b * T + t + 1, :] for b in range(B)]
        gi_steps.append(jnp.concatenate(rows, axis=0))             # (B, 3*GL)

    # Loop-invariant recurrent weight rows: lane m of w_?[j] holds
    # W_hh[gate*H + m, j].  Broadcast to (B, GL) ONCE here so the unrolled loop
    # body contains no repeated implicit broadcasts (JAX does not CSE them).
    w_r = [jnp.broadcast_to(whh[j:j + 1, 0:GL], (B, GL)) for j in range(H)]
    w_z = [jnp.broadcast_to(whh[j:j + 1, GL:2 * GL], (B, GL)) for j in range(H)]
    w_n = [jnp.broadcast_to(whh[j:j + 1, 2 * GL:3 * GL], (B, GL)) for j in range(H)]
    bhn_b = jnp.broadcast_to(bhn, (B, GL))

    # Serial recurrence: statically unrolled, pure VPU, h stays in vregs.
    h = jnp.zeros((B, GL), jnp.float32)               # state lives in lanes [0, H)
    hs = []
    for t in range(T):
        g = gi_steps[t]
        gi_r = g[:, 0:GL]
        gi_z = g[:, GL:2 * GL]
        gi_n = g[:, 2 * GL:3 * GL]

        # H lane-broadcasts of the hidden components, reused by all three gates.
        hb = [jnp.broadcast_to(h[:, j:j + 1], (B, GL)) for j in range(H)]

        gh_r = hb[0] * w_r[0]
        gh_z = hb[0] * w_z[0]
        gh_n = bhn_b + hb[0] * w_n[0]                 # gh_n carries b_hn
        for j in range(1, H):
            gh_r = gh_r + hb[j] * w_r[j]
            gh_z = gh_z + hb[j] * w_z[j]
            gh_n = gh_n + hb[j] * w_n[j]

        r = jax.nn.sigmoid(gi_r + gh_r)
        z = jax.nn.sigmoid(gi_z + gh_z)
        n = jnp.tanh(gi_n + r * gh_n)
        h = (1.0 - z) * n + z * h
        hs.append(h)

    # Single hoisted epilogue: assemble b-major (B*T, H), one sigmoid/exp pass,
    # one store (one writeback DMA).
    per_b = [jnp.concatenate([hs[t][b:b + 1, :] for t in range(T)], axis=0)
             for b in range(B)]                        # B x (T, GL)
    big = jnp.concatenate(per_b, axis=0)[:, 0:H]       # (B*T, H), row b*T + t
    col = jax.lax.broadcasted_iota(jnp.int32, (B * T, H), 1)
    out_ref[...] = jnp.where(col == 0, jax.nn.sigmoid(big),
                             jnp.exp(big)).astype(out_ref.dtype)


def _build_param_slab(w_ih, w_hh, b_ih, b_hh):
    """Pack all GRU parameters into ONE gate-aligned, (8,128)-tiled f32 slab.

    Lane layout: gate g occupies lanes [g*_GL, g*_GL + H).
    Row layout:
      rows [0, C)        : W_ih^T (input projection, MXU operand)
      row  C             : folded bias [b_ir+b_hr | b_iz+b_hz | b_in]
      rows [C+1, C+1+H)  : W_hh^T (recurrent weights, VPU rank-1 rows)
      row  C+1+H         : b_hn at lanes [0, H)
    """
    threeH, C = w_ih.shape
    H = threeH // 3
    n_rows = C + 1 + H + 1
    rpad = ((n_rows + 7) // 8) * 8

    w_ih = w_ih.astype(jnp.float32)
    w_hh = w_hh.astype(jnp.float32)
    b_ih = b_ih.astype(jnp.float32)
    b_hh = b_hh.astype(jnp.float32)
    b_comb = jnp.concatenate([b_ih[:2 * H] + b_hh[:2 * H], b_ih[2 * H:]])

    P = jnp.zeros((rpad, 3 * _GL), jnp.float32)
    for g in range(3):
        P = P.at[0:C, g * _GL:g * _GL + H].set(
            jnp.transpose(w_ih[g * H:(g + 1) * H, :]))
        P = P.at[C + 1:C + 1 + H, g * _GL:g * _GL + H].set(
            jnp.transpose(w_hh[g * H:(g + 1) * H, :]))
        P = P.at[C, g * _GL:g * _GL + H].set(b_comb[g * H:(g + 1) * H])
    P = P.at[C + 1 + H, 0:H].set(b_hh[2 * H:3 * H])
    return P


@jax.jit
def gru_bgmm_forward(x, w_ih, w_hh, b_ih, b_hh):
    """x: (B, T, C) float (batch_first) or (B, C). Returns (B*T, H) float32."""
    if x.ndim < 3:
        x = x[:, None, :]          # mirrors torch.unsqueeze(x, 1): seq length 1
    B, T, C = x.shape
    H = w_hh.shape[1]
    assert w_ih.shape == (3 * H, C) and w_hh.shape == (3 * H, H)

    # Contiguous (B, T, C) -> (B*T, C): metadata-only reshape, no transpose.
    x2 = x.reshape(B * T, C).astype(jnp.float32)
    P = _build_param_slab(w_ih, w_hh, b_ih, b_hh)

    cost = pl.CostEstimate(
        flops=2 * B * T * 3 * _GL * (C + H),
        transcendentals=3 * T * B * _GL + 2 * B * T * H,
        bytes_accessed=4 * (B * T * C + P.shape[0] * P.shape[1] + B * T * H),
    )
    vmem = pl.BlockSpec(memory_space=pltpu.MemorySpace.VMEM)

    # Single kernel invocation, no grid: total footprint is a few tens of KiB,
    # far below VMEM on v5e/v6e (128 MiB) and v7x (64 MiB).  If this op is ever
    # run over many independent sequences, add a leading "parallel" batch grid
    # axis so v7x's second TensorCore is used; at B=2 a grid only adds overhead.
    out = pl.pallas_call(
        functools.partial(_gru_bgmm_kernel, T=T, B=B, C=C, H=H),
        out_shape=jax.ShapeDtypeStruct((B * T, H), jnp.float32),
        in_specs=[vmem, vmem],
        out_specs=vmem,
        cost_estimate=cost,
    )(x2, P)

    # Already in torch's reshape order (row b*T + t); no post-call transpose.
    return out


def _reference_gru_bgmm(x, w_ih, w_hh, b_ih, b_hh):
    """Pure-JAX reference (same math as torch.nn.GRU + bgmm head)."""
    B, T, C = x.shape
    H = w_hh.shape[1]
    h0 = jnp.zeros((B, H), jnp.float32)

    def step(h, x_t):
        gi = x_t @ w_ih.T + b_ih
        gh = h @ w_hh.T + b_hh
        i_r, i_z, i_n = gi[:, :H], gi[:, H:2 * H], gi[:, 2 * H:]
        h_r, h_z, h_n = gh[:, :H], gh[:, H:2 * H], gh[:, 2 * H:]
        r = jax.nn.sigmoid(i_r + h_r)
        z = jax.nn.sigmoid(i_z + h_z)
        n = jnp.tanh(i_n + r * h_n)
        h_new = (1.0 - z) * n + z * h
        return h_new, h_new

    _, hs = jax.lax.scan(step, h0, jnp.transpose(x, (1, 0, 2)))
    z = jnp.transpose(hs, (1, 0, 2)).reshape(B * T, H)
    return jnp.concatenate([jax.nn.sigmoid(z[:, :1]), jnp.exp(z[:, 1:])], axis=1)


if __name__ == "__main__":
    # Force accurate f32 matmuls on both the kernel and the reference path.
    jax.config.update("jax_default_matmul_precision", "highest")

    # Module config: GRU(in_channels=4, likelihood_fn='bgmm') -> hidden/out = 3
    in_channels = 4
    hidden = 3            # out_channels for 'bgmm'
    B, T = 2, 8

    key = jax.random.PRNGKey(0)
    kx, k1, k2, k3, k4 = jax.random.split(key, 5)

    # Same shape/scale convention as torch.nn.GRU: uniform(-1/sqrt(H), 1/sqrt(H)).
    bound = 1.0 / jnp.sqrt(jnp.float32(hidden))
    w_ih = jax.random.uniform(k1, (3 * hidden, in_channels), jnp.float32, -bound, bound)
    w_hh = jax.random.uniform(k2, (3 * hidden, hidden), jnp.float32, -bound, bound)
    b_ih = jax.random.uniform(k3, (3 * hidden,), jnp.float32, -bound, bound)
    b_hh = jax.random.uniform(k4, (3 * hidden,), jnp.float32, -bound, bound)

    x = jax.random.normal(kx, (B, T, in_channels), jnp.float32)

    out = gru_bgmm_forward(x, w_ih, w_hh, b_ih, b_hh)
    out = jax.block_until_ready(out)

    ref = _reference_gru_bgmm(x, w_ih, w_hh, b_ih, b_hh)
    assert out.shape == (B * T, hidden), out.shape
    assert jnp.allclose(out, ref, atol=1e-4, rtol=1e-4), "mismatch vs reference"

    print("KERNEL_OK")
</pallas_src>

<mosaic_0001>
module attributes {stable_mosaic.version = 11 : i64} {
  func.func @_gru_bgmm_kernel(%arg0: memref<16x4xf32, #tpu.memory_space<vmem>>, %arg1: memref<16x384xf32, #tpu.memory_space<vmem>>, %arg2: memref<16x3xf32, #tpu.memory_space<vmem>>) attributes {dimension_semantics = [], scalar_prefetch = 0 : i64, scratch_operands = 0 : i64, tpu.core_type = #tpu.core_type<tc>} {
    %c0 = arith.constant 0 : index
    %c0_0 = arith.constant 0 : index
    %0 = vector.load %arg1[%c0, %c0_0] : memref<16x384xf32, #tpu.memory_space<vmem>>, vector<16x384xf32>
    %1 = vector.extract_strided_slice %0 {offsets = [0, 0], sizes = [4, 384], strides = [1, 1]} : vector<16x384xf32> to vector<4x384xf32>
    %2 = vector.extract_strided_slice %0 {offsets = [4, 0], sizes = [1, 384], strides = [1, 1]} : vector<16x384xf32> to vector<1x384xf32>
    %3 = vector.extract_strided_slice %0 {offsets = [5, 0], sizes = [3, 384], strides = [1, 1]} : vector<16x384xf32> to vector<3x384xf32>
    %4 = vector.extract_strided_slice %0 {offsets = [8, 0], sizes = [1, 128], strides = [1, 1]} : vector<16x384xf32> to vector<1x128xf32>
    %c0_1 = arith.constant 0 : index
    %c0_2 = arith.constant 0 : index
    %5 = vector.load %arg0[%c0_1, %c0_2] : memref<16x4xf32, #tpu.memory_space<vmem>>, vector<16x4xf32>
    %cst = arith.constant dense<0.000000e+00> : vector<16x384xf32>
    %6 = tpu.matmul %5, %1, %cst {dimension_numbers = #tpu.dot_dimension_numbers<[1], [0], [0], [1], [0, 0, 1, 1], [], []>, precision = #tpu.contract_precision<fp32>} : vector<16x4xf32>, vector<4x384xf32>, vector<16x384xf32> -> vector<16x384xf32>
    %7 = vector.broadcast %2 : vector<1x384xf32> to vector<16x384xf32>
    %8 = arith.addf %6, %7 : vector<16x384xf32>
    %9 = vector.extract_strided_slice %8 {offsets = [0, 0], sizes = [1, 384], strides = [1, 1]} : vector<16x384xf32> to vector<1x384xf32>
    %10 = vector.extract_strided_slice %8 {offsets = [8, 0], sizes = [1, 384], strides = [1, 1]} : vector<16x384xf32> to vector<1x384xf32>
    %11 = tpu.concatenate %9, %10 in 0 : vector<1x384xf32>, vector<1x384xf32> -> vector<2x384xf32>
    %12 = vector.extract_strided_slice %8 {offsets = [1, 0], sizes = [1, 384], strides = [1, 1]} : vector<16x384xf32> to vector<1x384xf32>
    %13 = vector.extract_strided_slice %8 {offsets = [9, 0], sizes = [1, 384], strides = [1, 1]} : vector<16x384xf32> to vector<1x384xf32>
    %14 = tpu.concatenate %12, %13 in 0 : vector<1x384xf32>, vector<1x384xf32> -> vector<2x384xf32>
    %15 = vector.extract_strided_slice %8 {offsets = [2, 0], sizes = [1, 384], strides = [1, 1]} : vector<16x384xf32> to vector<1x384xf32>
    %16 = vector.extract_strided_slice %8 {offsets = [10, 0], sizes = [1, 384], strides = [1, 1]} : vector<16x384xf32> to vector<1x384xf32>
    %17 = tpu.concatenate %15, %16 in 0 : vector<1x384xf32>, vector<1x384xf32> -> vector<2x384xf32>
    %18 = vector.extract_strided_slice %8 {offsets = [3, 0], sizes = [1, 384], strides = [1, 1]} : vector<16x384xf32> to vector<1x384xf32>
    %19 = vector.extract_strided_slice %8 {offsets = [11, 0], sizes = [1, 384], strides = [1, 1]} : vector<16x384xf32> to vector<1x384xf32>
    %20 = tpu.concatenate %18, %19 in 0 : vector<1x384xf32>, vector<1x384xf32> -> vector<2x384xf32>
    %21 = vector.extract_strided_slice %8 {offsets = [4, 0], sizes = [1, 384], strides = [1, 1]} : vector<16x384xf32> to vector<1x384xf32>
    %22 = vector.extract_strided_slice %8 {offsets = [12, 0], sizes = [1, 384], strides = [1, 1]} : vector<16x384xf32> to vector<1x384xf32>
    %23 = tpu.concatenate %21, %22 in 0 : vector<1x384xf32>, vector<1x384xf32> -> vector<2x384xf32>
    %24 = vector.extract_strided_slice %8 {offsets = [5, 0], sizes = [1, 384], strides = [1, 1]} : vector<16x384xf32> to vector<1x384xf32>
    %25 = vector.extract_strided_slice %8 {offsets = [13, 0], sizes = [1, 384], strides = [1, 1]} : vector<16x384xf32> to vector<1x384xf32>
    %26 = tpu.concatenate %24, %25 in 0 : vector<1x384xf32>, vector<1x384xf32> -> vector<2x384xf32>
    %27 = vector.extract_strided_slice %8 {offsets = [6, 0], sizes = [1, 384], strides = [1, 1]} : vector<16x384xf32> to vector<1x384xf32>
    %28 = vector.extract_strided_slice %8 {offsets = [14, 0], sizes = [1, 384], strides = [1, 1]} : vector<16x384xf32> to vector<1x384xf32>
    %29 = tpu.concatenate %27, %28 in 0 : vector<1x384xf32>, vector<1x384xf32> -> vector<2x384xf32>
    %30 = vector.extract_strided_slice %8 {offsets = [7, 0], sizes = [1, 384], strides = [1, 1]} : vector<16x384xf32> to vector<1x384xf32>
    %31 = vector.extract_strided_slice %8 {offsets = [15, 0], sizes = [1, 384], strides = [1, 1]} : vector<16x384xf32> to vector<1x384xf32>
    %32 = tpu.concatenate %30, %31 in 0 : vector<1x384xf32>, vector<1x384xf32> -> vector<2x384xf32>
    %33 = vector.extract_strided_slice %3 {offsets = [0, 0], sizes = [1, 128], strides = [1, 1]} : vector<3x384xf32> to vector<1x128xf32>
    %34 = vector.shape_cast %33 : vector<1x128xf32> to vector<1x128xf32>
    %35 = vector.broadcast %34 : vector<1x128xf32> to vector<2x128xf32>
    %36 = vector.extract_strided_slice %3 {offsets = [1, 0], sizes = [1, 128], strides = [1, 1]} : vector<3x384xf32> to vector<1x128xf32>
    %37 = vector.shape_cast %36 : vector<1x128xf32> to vector<1x128xf32>
    %38 = vector.broadcast %37 : vector<1x128xf32> to vector<2x128xf32>
    %39 = vector.extract_strided_slice %3 {offsets = [2, 0], sizes = [1, 128], strides = [1, 1]} : vector<3x384xf32> to vector<1x128xf32>
    %40 = vector.shape_cast %39 : vector<1x128xf32> to vector<1x128xf32>
    %41 = vector.broadcast %40 : vector<1x128xf32> to vector<2x128xf32>
    %42 = vector.extract_strided_slice %3 {offsets = [0, 128], sizes = [1, 128], strides = [1, 1]} : vector<3x384xf32> to vector<1x128xf32>
    %43 = vector.shape_cast %42 : vector<1x128xf32> to vector<1x128xf32>
    %44 = vector.broadcast %43 : vector<1x128xf32> to vector<2x128xf32>
    %45 = vector.extract_strided_slice %3 {offsets = [1, 128], sizes = [1, 128], strides = [1, 1]} : vector<3x384xf32> to vector<1x128xf32>
    %46 = vector.shape_cast %45 : vector<1x128xf32> to vector<1x128xf32>
    %47 = vector.broadcast %46 : vector<1x128xf32> to vector<2x128xf32>
    %48 = vector.extract_strided_slice %3 {offsets = [2, 128], sizes = [1, 128], strides = [1, 1]} : vector<3x384xf32> to vector<1x128xf32>
    %49 = vector.shape_cast %48 : vector<1x128xf32> to vector<1x128xf32>
    %50 = vector.broadcast %49 : vector<1x128xf32> to vector<2x128xf32>
    %51 = vector.extract_strided_slice %3 {offsets = [0, 256], sizes = [1, 128], strides = [1, 1]} : vector<3x384xf32> to vector<1x128xf32>
    %52 = vector.shape_cast %51 : vector<1x128xf32> to vector<1x128xf32>
    %53 = vector.broadcast %52 : vector<1x128xf32> to vector<2x128xf32>
    %54 = vector.extract_strided_slice %3 {offsets = [1, 256], sizes = [1, 128], strides = [1, 1]} : vector<3x384xf32> to vector<1x128xf32>
    %55 = vector.shape_cast %54 : vector<1x128xf32> to vector<1x128xf32>
    %56 = vector.broadcast %55 : vector<1x128xf32> to vector<2x128xf32>
    %57 = vector.extract_strided_slice %3 {offsets = [2, 256], sizes = [1, 128], strides = [1, 1]} : vector<3x384xf32> to vector<1x128xf32>
    %58 = vector.shape_cast %57 : vector<1x128xf32> to vector<1x128xf32>
    %59 = vector.broadcast %58 : vector<1x128xf32> to vector<2x128xf32>
    %60 = vector.shape_cast %4 : vector<1x128xf32> to vector<1x128xf32>
    %61 = vector.broadcast %60 : vector<1x128xf32> to vector<2x128xf32>
    %cst_3 = arith.constant 0.000000e+00 : f32
    %62 = vector.broadcast %cst_3 : f32 to vector<2x128xf32>
    %63 = vector.extract_strided_slice %11 {offsets = [0, 0], sizes = [2, 128], strides = [1, 1]} : vector<2x384xf32> to vector<2x128xf32>
    %64 = vector.extract_strided_slice %11 {offsets = [0, 128], sizes = [2, 128], strides = [1, 1]} : vector<2x384xf32> to vector<2x128xf32>
    %65 = vector.extract_strided_slice %11 {offsets = [0, 256], sizes = [2, 128], strides = [1, 1]} : vector<2x384xf32> to vector<2x128xf32>
    %66 = vector.extract_strided_slice %62 {offsets = [0, 0], sizes = [2, 1], strides = [1, 1]} : vector<2x128xf32> to vector<2x1xf32>
    %67 = vector.shape_cast %66 : vector<2x1xf32> to vector<2x1xf32>
    %68 = vector.broadcast %67 : vector<2x1xf32> to vector<2x128xf32>
    %69 = vector.extract_strided_slice %62 {offsets = [0, 1], sizes = [2, 1], strides = [1, 1]} : vector<2x128xf32> to vector<2x1xf32>
    %70 = vector.shape_cast %69 : vector<2x1xf32> to vector<2x1xf32>
    %71 = vector.broadcast %70 : vector<2x1xf32> to vector<2x128xf32>
    %72 = vector.extract_strided_slice %62 {offsets = [0, 2], sizes = [2, 1], strides = [1, 1]} : vector<2x128xf32> to vector<2x1xf32>
    %73 = vector.shape_cast %72 : vector<2x1xf32> to vector<2x1xf32>
    %74 = vector.broadcast %73 : vector<2x1xf32> to vector<2x128xf32>
    %75 = arith.mulf %68, %35 : vector<2x128xf32>
    %76 = arith.mulf %68, %44 : vector<2x128xf32>
    %77 = arith.mulf %68, %53 : vector<2x128xf32>
    %78 = arith.addf %61, %77 : vector<2x128xf32>
    %79 = arith.mulf %71, %38 : vector<2x128xf32>
    %80 = arith.addf %75, %79 : vector<2x128xf32>
    %81 = arith.mulf %71, %47 : vector<2x128xf32>
    %82 = arith.addf %76, %81 : vector<2x128xf32>
    %83 = arith.mulf %71, %56 : vector<2x128xf32>
    %84 = arith.addf %78, %83 : vector<2x128xf32>
    %85 = arith.mulf %74, %41 : vector<2x128xf32>
    %86 = arith.addf %80, %85 : vector<2x128xf32>
    %87 = arith.mulf %74, %50 : vector<2x128xf32>
    %88 = arith.addf %82, %87 : vector<2x128xf32>
    %89 = arith.mulf %74, %59 : vector<2x128xf32>
    %90 = arith.addf %84, %89 : vector<2x128xf32>
    %91 = arith.addf %63, %86 : vector<2x128xf32>
    %92 = arith.negf %91 : vector<2x128xf32>
    %93 = math.exp %92 : vector<2x128xf32>
    %cst_4 = arith.constant 1.000000e+00 : f32
    %94 = vector.broadcast %cst_4 : f32 to vector<2x128xf32>
    %95 = arith.addf %94, %93 : vector<2x128xf32>
    %96 = arith.divf %94, %95 : vector<2x128xf32>
    %97 = arith.addf %64, %88 : vector<2x128xf32>
    %98 = arith.negf %97 : vector<2x128xf32>
    %99 = math.exp %98 : vector<2x128xf32>
    %cst_5 = arith.constant 1.000000e+00 : f32
    %100 = vector.broadcast %cst_5 : f32 to vector<2x128xf32>
    %101 = arith.addf %100, %99 : vector<2x128xf32>
    %102 = arith.divf %100, %101 : vector<2x128xf32>
    %103 = arith.mulf %96, %90 : vector<2x128xf32>
    %104 = arith.addf %65, %103 : vector<2x128xf32>
    %105 = math.tanh %104 : vector<2x128xf32>
    %cst_6 = arith.constant 1.000000e+00 : f32
    %106 = vector.broadcast %cst_6 : f32 to vector<2x128xf32>
    %107 = arith.subf %106, %102 : vector<2x128xf32>
    %108 = arith.mulf %107, %105 : vector<2x128xf32>
    %109 = arith.mulf %102, %62 : vector<2x128xf32>
    %110 = arith.addf %108, %109 : vector<2x128xf32>
    %111 = vector.extract_strided_slice %14 {offsets = [0, 0], sizes = [2, 128], strides = [1, 1]} : vector<2x384xf32> to vector<2x128xf32>
    %112 = vector.extract_strided_slice %14 {offsets = [0, 128], sizes = [2, 128], strides = [1, 1]} : vector<2x384xf32> to vector<2x128xf32>
    %113 = vector.extract_strided_slice %14 {offsets = [0, 256], sizes = [2, 128], strides = [1, 1]} : vector<2x384xf32> to vector<2x128xf32>
    %114 = vector.extract_strided_slice %110 {offsets = [0, 0], sizes = [2, 1], strides = [1, 1]} : vector<2x128xf32> to vector<2x1xf32>
    %115 = vector.shape_cast %114 : vector<2x1xf32> to vector<2x1xf32>
    %116 = vector.broadcast %115 : vector<2x1xf32> to vector<2x128xf32>
    %117 = vector.extract_strided_slice %110 {offsets = [0, 1], sizes = [2, 1], strides = [1, 1]} : vector<2x128xf32> to vector<2x1xf32>
    %118 = vector.shape_cast %117 : vector<2x1xf32> to vector<2x1xf32>
    %119 = vector.broadcast %118 : vector<2x1xf32> to vector<2x128xf32>
    %120 = vector.extract_strided_slice %110 {offsets = [0, 2], sizes = [2, 1], strides = [1, 1]} : vector<2x128xf32> to vector<2x1xf32>
    %121 = vector.shape_cast %120 : vector<2x1xf32> to vector<2x1xf32>
    %122 = vector.broadcast %121 : vector<2x1xf32> to vector<2x128xf32>
    %123 = arith.mulf %116, %35 : vector<2x128xf32>
    %124 = arith.mulf %116, %44 : vector<2x128xf32>
    %125 = arith.mulf %116, %53 : vector<2x128xf32>
    %126 = arith.addf %61, %125 : vector<2x128xf32>
    %127 = arith.mulf %119, %38 : vector<2x128xf32>
    %128 = arith.addf %123, %127 : vector<2x128xf32>
    %129 = arith.mulf %119, %47 : vector<2x128xf32>
    %130 = arith.addf %124, %129 : vector<2x128xf32>
    %131 = arith.mulf %119, %56 : vector<2x128xf32>
    %132 = arith.addf %126, %131 : vector<2x128xf32>
    %133 = arith.mulf %122, %41 : vector<2x128xf32>
    %134 = arith.addf %128, %133 : vector<2x128xf32>
    %135 = arith.mulf %122, %50 : vector<2x128xf32>
    %136 = arith.addf %130, %135 : vector<2x128xf32>
    %137 = arith.mulf %122, %59 : vector<2x128xf32>
    %138 = arith.addf %132, %137 : vector<2x128xf32>
    %139 = arith.addf %111, %134 : vector<2x128xf32>
    %140 = arith.negf %139 : vector<2x128xf32>
    %141 = math.exp %140 : vector<2x128xf32>
    %cst_7 = arith.constant 1.000000e+00 : f32
    %142 = vector.broadcast %cst_7 : f32 to vector<2x128xf32>
    %143 = arith.addf %142, %141 : vector<2x128xf32>
    %144 = arith.divf %142, %143 : vector<2x128xf32>
    %145 = arith.addf %112, %136 : vector<2x128xf32>
    %146 = arith.negf %145 : vector<2x128xf32>
    %147 = math.exp %146 : vector<2x128xf32>
    %cst_8 = arith.constant 1.000000e+00 : f32
    %148 = vector.broadcast %cst_8 : f32 to vector<2x128xf32>
    %149 = arith.addf %148, %147 : vector<2x128xf32>
    %150 = arith.divf %148, %149 : vector<2x128xf32>
    %151 = arith.mulf %144, %138 : vector<2x128xf32>
    %152 = arith.addf %113, %151 : vector<2x128xf32>
    %153 = math.tanh %152 : vector<2x128xf32>
    %cst_9 = arith.constant 1.000000e+00 : f32
    %154 = vector.broadcast %cst_9 : f32 to vector<2x128xf32>
    %155 = arith.subf %154, %150 : vector<2x128xf32>
    %156 = arith.mulf %155, %153 : vector<2x128xf32>
    %157 = arith.mulf %150, %110 : vector<2x128xf32>
    %158 = arith.addf %156, %157 : vector<2x128xf32>
    %159 = vector.extract_strided_slice %17 {offsets = [0, 0], sizes = [2, 128], strides = [1, 1]} : vector<2x384xf32> to vector<2x128xf32>
    %160 = vector.extract_strided_slice %17 {offsets = [0, 128], sizes = [2, 128], strides = [1, 1]} : vector<2x384xf32> to vector<2x128xf32>
    %161 = vector.extract_strided_slice %17 {offsets = [0, 256], sizes = [2, 128], strides = [1, 1]} : vector<2x384xf32> to vector<2x128xf32>
    %162 = vector.extract_strided_slice %158 {offsets = [0, 0], sizes = [2, 1], strides = [1, 1]} : vector<2x128xf32> to vector<2x1xf32>
    %163 = vector.shape_cast %162 : vector<2x1xf32> to vector<2x1xf32>
    %164 = vector.broadcast %163 : vector<2x1xf32> to vector<2x128xf32>
    %165 = vector.extract_strided_slice %158 {offsets = [0, 1], sizes = [2, 1], strides = [1, 1]} : vector<2x128xf32> to vector<2x1xf32>
    %166 = vector.shape_cast %165 : vector<2x1xf32> to vector<2x1xf32>
    %167 = vector.broadcast %166 : vector<2x1xf32> to vector<2x128xf32>
    %168 = vector.extract_strided_slice %158 {offsets = [0, 2], sizes = [2, 1], strides = [1, 1]} : vector<2x128xf32> to vector<2x1xf32>
    %169 = vector.shape_cast %168 : vector<2x1xf32> to vector<2x1xf32>
    %170 = vector.broadcast %169 : vector<2x1xf32> to vector<2x128xf32>
    %171 = arith.mulf %164, %35 : vector<2x128xf32>
    %172 = arith.mulf %164, %44 : vector<2x128xf32>
    %173 = arith.mulf %164, %53 : vector<2x128xf32>
    %174 = arith.addf %61, %173 : vector<2x128xf32>
    %175 = arith.mulf %167, %38 : vector<2x128xf32>
    %176 = arith.addf %171, %175 : vector<2x128xf32>
    %177 = arith.mulf %167, %47 : vector<2x128xf32>
    %178 = arith.addf %172, %177 : vector<2x128xf32>
    %179 = arith.mulf %167, %56 : vector<2x128xf32>
    %180 = arith.addf %174, %179 : vector<2x128xf32>
    %181 = arith.mulf %170, %41 : vector<2x128xf32>
    %182 = arith.addf %176, %181 : vector<2x128xf32>
    %183 = arith.mulf %170, %50 : vector<2x128xf32>
    %184 = arith.addf %178, %183 : vector<2x128xf32>
    %185 = arith.mulf %170, %59 : vector<2x128xf32>
    %186 = arith.addf %180, %185 : vector<2x128xf32>
    %187 = arith.addf %159, %182 : vector<2x128xf32>
    %188 = arith.negf %187 : vector<2x128xf32>
    %189 = math.exp %188 : vector<2x128xf32>
    %cst_10 = arith.constant 1.000000e+00 : f32
    %190 = vector.broadcast %cst_10 : f32 to vector<2x128xf32>
    %191 = arith.addf %190, %189 : vector<2x128xf32>
    %192 = arith.divf %190, %191 : vector<2x128xf32>
    %193 = arith.addf %160, %184 : vector<2x128xf32>
    %194 = arith.negf %193 : vector<2x128xf32>
    %195 = math.exp %194 : vector<2x128xf32>
    %cst_11 = arith.constant 1.000000e+00 : f32
    %196 = vector.broadcast %cst_11 : f32 to vector<2x128xf32>
    %197 = arith.addf %196, %195 : vector<2x128xf32>
    %198 = arith.divf %196, %197 : vector<2x128xf32>
    %199 = arith.mulf %192, %186 : vector<2x128xf32>
    %200 = arith.addf %161, %199 : vector<2x128xf32>
    %201 = math.tanh %200 : vector<2x128xf32>
    %cst_12 = arith.constant 1.000000e+00 : f32
    %202 = vector.broadcast %cst_12 : f32 to vector<2x128xf32>
    %203 = arith.subf %202, %198 : vector<2x128xf32>
    %204 = arith.mulf %203, %201 : vector<2x128xf32>
    %205 = arith.mulf %198, %158 : vector<2x128xf32>
    %206 = arith.addf %204, %205 : vector<2x128xf32>
    %207 = vector.extract_strided_slice %20 {offsets = [0, 0], sizes = [2, 128], strides = [1, 1]} : vector<2x384xf32> to vector<2x128xf32>
    %208 = vector.extract_strided_slice %20 {offsets = [0, 128], sizes = [2, 128], strides = [1, 1]} : vector<2x384xf32> to vector<2x128xf32>
    %209 = vector.extract_strided_slice %20 {offsets = [0, 256], sizes = [2, 128], strides = [1, 1]} : vector<2x384xf32> to vector<2x128xf32>
    %210 = vector.extract_strided_slice %206 {offsets = [0, 0], sizes = [2, 1], strides = [1, 1]} : vector<2x128xf32> to vector<2x1xf32>
    %211 = vector.shape_cast %210 : vector<2x1xf32> to vector<2x1xf32>
    %212 = vector.broadcast %211 : vector<2x1xf32> to vector<2x128xf32>
    %213 = vector.extract_strided_slice %206 {offsets = [0, 1], sizes = [2, 1], strides = [1, 1]} : vector<2x128xf32> to vector<2x1xf32>
    %214 = vector.shape_cast %213 : vector<2x1xf32> to vector<2x1xf32>
    %215 = vector.broadcast %214 : vector<2x1xf32> to vector<2x128xf32>
    %216 = vector.extract_strided_slice %206 {offsets = [0, 2], sizes = [2, 1], strides = [1, 1]} : vector<2x128xf32> to vector<2x1xf32>
    %217 = vector.shape_cast %216 : vector<2x1xf32> to vector<2x1xf32>
    %218 = vector.broadcast %217 : vector<2x1xf32> to vector<2x128xf32>
    %219 = arith.mulf %212, %35 : vector<2x128xf32>
    %220 = arith.mulf %212, %44 : vector<2x128xf32>
    %221 = arith.mulf %212, %53 : vector<2x128xf32>
    %222 = arith.addf %61, %221 : vector<2x128xf32>
    %223 = arith.mulf %215, %38 : vector<2x128xf32>
    %224 = arith.addf %219, %223 : vector<2x128xf32>
    %225 = arith.mulf %215, %47 : vector<2x128xf32>
    %226 = arith.addf %220, %225 : vector<2x128xf32>
    %227 = arith.mulf %215, %56 : vector<2x128xf32>
    %228 = arith.addf %222, %227 : vector<2x128xf32>
    %229 = arith.mulf %218, %41 : vector<2x128xf32>
    %230 = arith.addf %224, %229 : vector<2x128xf32>
    %231 = arith.mulf %218, %50 : vector<2x128xf32>
    %232 = arith.addf %226, %231 : vector<2x128xf32>
    %233 = arith.mulf %218, %59 : vector<2x128xf32>
    %234 = arith.addf %228, %233 : vector<2x128xf32>
    %235 = arith.addf %207, %230 : vector<2x128xf32>
    %236 = arith.negf %235 : vector<2x128xf32>
    %237 = math.exp %236 : vector<2x128xf32>
    %cst_13 = arith.constant 1.000000e+00 : f32
    %238 = vector.broadcast %cst_13 : f32 to vector<2x128xf32>
    %239 = arith.addf %238, %237 : vector<2x128xf32>
    %240 = arith.divf %238, %239 : vector<2x128xf32>
    %241 = arith.addf %208, %232 : vector<2x128xf32>
    %242 = arith.negf %241 : vector<2x128xf32>
    %243 = math.exp %242 : vector<2x128xf32>
    %cst_14 = arith.constant 1.000000e+00 : f32
    %244 = vector.broadcast %cst_14 : f32 to vector<2x128xf32>
    %245 = arith.addf %244, %243 : vector<2x128xf32>
    %246 = arith.divf %244, %245 : vector<2x128xf32>
    %247 = arith.mulf %240, %234 : vector<2x128xf32>
    %248 = arith.addf %209, %247 : vector<2x128xf32>
    %249 = math.tanh %248 : vector<2x128xf32>
    %cst_15 = arith.constant 1.000000e+00 : f32
    %250 = vector.broadcast %cst_15 : f32 to vector<2x128xf32>
    %251 = arith.subf %250, %246 : vector<2x128xf32>
    %252 = arith.mulf %251, %249 : vector<2x128xf32>
    %253 = arith.mulf %246, %206 : vector<2x128xf32>
    %254 = arith.addf %252, %253 : vector<2x128xf32>
    %255 = vector.extract_strided_slice %23 {offsets = [0, 0], sizes = [2, 128], strides = [1, 1]} : vector<2x384xf32> to vector<2x128xf32>
    %256 = vector.extract_strided_slice %23 {offsets = [0, 128], sizes = [2, 128], strides = [1, 1]} : vector<2x384xf32> to vector<2x128xf32>
    %257 = vector.extract_strided_slice %23 {offsets = [0, 256], sizes = [2, 128], strides = [1, 1]} : vector<2x384xf32> to vector<2x128xf32>
    %258 = vector.extract_strided_slice %254 {offsets = [0, 0], sizes = [2, 1], strides = [1, 1]} : vector<2x128xf32> to vector<2x1xf32>
    %259 = vector.shape_cast %258 : vector<2x1xf32> to vector<2x1xf32>
    %260 = vector.broadcast %259 : vector<2x1xf32> to vector<2x128xf32>
    %261 = vector.extract_strided_slice %254 {offsets = [0, 1], sizes = [2, 1], strides = [1, 1]} : vector<2x128xf32> to vector<2x1xf32>
    %262 = vector.shape_cast %261 : vector<2x1xf32> to vector<2x1xf32>
    %263 = vector.broadcast %262 : vector<2x1xf32> to vector<2x128xf32>
    %264 = vector.extract_strided_slice %254 {offsets = [0, 2], sizes = [2, 1], strides = [1, 1]} : vector<2x128xf32> to vector<2x1xf32>
    %265 = vector.shape_cast %264 : vector<2x1xf32> to vector<2x1xf32>
    %266 = vector.broadcast %265 : vector<2x1xf32> to vector<2x128xf32>
    %267 = arith.mulf %260, %35 : vector<2x128xf32>
    %268 = arith.mulf %260, %44 : vector<2x128xf32>
    %269 = arith.mulf %260, %53 : vector<2x128xf32>
    %270 = arith.addf %61, %269 : vector<2x128xf32>
    %271 = arith.mulf %263, %38 : vector<2x128xf32>
    %272 = arith.addf %267, %271 : vector<2x128xf32>
    %273 = arith.mulf %263, %47 : vector<2x128xf32>
    %274 = arith.addf %268, %273 : vector<2x128xf32>
    %275 = arith.mulf %263, %56 : vector<2x128xf32>
    %276 = arith.addf %270, %275 : vector<2x128xf32>
    %277 = arith.mulf %266, %41 : vector<2x128xf32>
    %278 = arith.addf %272, %277 : vector<2x128xf32>
    %279 = arith.mulf %266, %50 : vector<2x128xf32>
    %280 = arith.addf %274, %279 : vector<2x128xf32>
    %281 = arith.mulf %266, %59 : vector<2x128xf32>
    %282 = arith.addf %276, %281 : vector<2x128xf32>
    %283 = arith.addf %255, %278 : vector<2x128xf32>
    %284 = arith.negf %283 : vector<2x128xf32>
    %285 = math.exp %284 : vector<2x128xf32>
    %cst_16 = arith.constant 1.000000e+00 : f32
    %286 = vector.broadcast %cst_16 : f32 to vector<2x128xf32>
    %287 = arith.addf %286, %285 : vector<2x128xf32>
    %288 = arith.divf %286, %287 : vector<2x128xf32>
    %289 = arith.addf %256, %280 : vector<2x128xf32>
    %290 = arith.negf %289 : vector<2x128xf32>
    %291 = math.exp %290 : vector<2x128xf32>
    %cst_17 = arith.constant 1.000000e+00 : f32
    %292 = vector.broadcast %cst_17 : f32 to vector<2x128xf32>
    %293 = arith.addf %292, %291 : vector<2x128xf32>
    %294 = arith.divf %292, %293 : vector<2x128xf32>
    %295 = arith.mulf %288, %282 : vector<2x128xf32>
    %296 = arith.addf %257, %295 : vector<2x128xf32>
    %297 = math.tanh %296 : vector<2x128xf32>
    %cst_18 = arith.constant 1.000000e+00 : f32
    %298 = vector.broadcast %cst_18 : f32 to vector<2x128xf32>
    %299 = arith.subf %298, %294 : vector<2x128xf32>
    %300 = arith.mulf %299, %297 : vector<2x128xf32>
    %301 = arith.mulf %294, %254 : vector<2x128xf32>
    %302 = arith.addf %300, %301 : vector<2x128xf32>
    %303 = vector.extract_strided_slice %26 {offsets = [0, 0], sizes = [2, 128], strides = [1, 1]} : vector<2x384xf32> to vector<2x128xf32>
    %304 = vector.extract_strided_slice %26 {offsets = [0, 128], sizes = [2, 128], strides = [1, 1]} : vector<2x384xf32> to vector<2x128xf32>
    %305 = vector.extract_strided_slice %26 {offsets = [0, 256], sizes = [2, 128], strides = [1, 1]} : vector<2x384xf32> to vector<2x128xf32>
    %306 = vector.extract_strided_slice %302 {offsets = [0, 0], sizes = [2, 1], strides = [1, 1]} : vector<2x128xf32> to vector<2x1xf32>
    %307 = vector.shape_cast %306 : vector<2x1xf32> to vector<2x1xf32>
    %308 = vector.broadcast %307 : vector<2x1xf32> to vector<2x128xf32>
    %309 = vector.extract_strided_slice %302 {offsets = [0, 1], sizes = [2, 1], strides = [1, 1]} : vector<2x128xf32> to vector<2x1xf32>
    %310 = vector.shape_cast %309 : vector<2x1xf32> to vector<2x1xf32>
    %311 = vector.broadcast %310 : vector<2x1xf32> to vector<2x128xf32>
    %312 = vector.extract_strided_slice %302 {offsets = [0, 2], sizes = [2, 1], strides = [1, 1]} : vector<2x128xf32> to vector<2x1xf32>
    %313 = vector.shape_cast %312 : vector<2x1xf32> to vector<2x1xf32>
    %314 = vector.broadcast %313 : vector<2x1xf32> to vector<2x128xf32>
    %315 = arith.mulf %308, %35 : vector<2x128xf32>
    %316 = arith.mulf %308, %44 : vector<2x128xf32>
    %317 = arith.mulf %308, %53 : vector<2x128xf32>
    %318 = arith.addf %61, %317 : vector<2x128xf32>
    %319 = arith.mulf %311, %38 : vector<2x128xf32>
    %320 = arith.addf %315, %319 : vector<2x128xf32>
    %321 = arith.mulf %311, %47 : vector<2x128xf32>
    %322 = arith.addf %316, %321 : vector<2x128xf32>
    %323 = arith.mulf %311, %56 : vector<2x128xf32>
    %324 = arith.addf %318, %323 : vector<2x128xf32>
    %325 = arith.mulf %314, %41 : vector<2x128xf32>
    %326 = arith.addf %320, %325 : vector<2x128xf32>
    %327 = arith.mulf %314, %50 : vector<2x128xf32>
    %328 = arith.addf %322, %327 : vector<2x128xf32>
    %329 = arith.mulf %314, %59 : vector<2x128xf32>
    %330 = arith.addf %324, %329 : vector<2x128xf32>
    %331 = arith.addf %303, %326 : vector<2x128xf32>
    %332 = arith.negf %331 : vector<2x128xf32>
    %333 = math.exp %332 : vector<2x128xf32>
    %cst_19 = arith.constant 1.000000e+00 : f32
    %334 = vector.broadcast %cst_19 : f32 to vector<2x128xf32>
    %335 = arith.addf %334, %333 : vector<2x128xf32>
    %336 = arith.divf %334, %335 : vector<2x128xf32>
    %337 = arith.addf %304, %328 : vector<2x128xf32>
    %338 = arith.negf %337 : vector<2x128xf32>
    %339 = math.exp %338 : vector<2x128xf32>
    %cst_20 = arith.constant 1.000000e+00 : f32
    %340 = vector.broadcast %cst_20 : f32 to vector<2x128xf32>
    %341 = arith.addf %340, %339 : vector<2x128xf32>
    %342 = arith.divf %340, %341 : vector<2x128xf32>
    %343 = arith.mulf %336, %330 : vector<2x128xf32>
    %344 = arith.addf %305, %343 : vector<2x128xf32>
    %345 = math.tanh %344 : vector<2x128xf32>
    %cst_21 = arith.constant 1.000000e+00 : f32
    %346 = vector.broadcast %cst_21 : f32 to vector<2x128xf32>
    %347 = arith.subf %346, %342 : vector<2x128xf32>
    %348 = arith.mulf %347, %345 : vector<2x128xf32>
    %349 = arith.mulf %342, %302 : vector<2x128xf32>
    %350 = arith.addf %348, %349 : vector<2x128xf32>
    %351 = vector.extract_strided_slice %29 {offsets = [0, 0], sizes = [2, 128], strides = [1, 1]} : vector<2x384xf32> to vector<2x128xf32>
    %352 = vector.extract_strided_slice %29 {offsets = [0, 128], sizes = [2, 128], strides = [1, 1]} : vector<2x384xf32> to vector<2x128xf32>
    %353 = vector.extract_strided_slice %29 {offsets = [0, 256], sizes = [2, 128], strides = [1, 1]} : vector<2x384xf32> to vector<2x128xf32>
    %354 = vector.extract_strided_slice %350 {offsets = [0, 0], sizes = [2, 1], strides = [1, 1]} : vector<2x128xf32> to vector<2x1xf32>
    %355 = vector.shape_cast %354 : vector<2x1xf32> to vector<2x1xf32>
    %356 = vector.broadcast %355 : vector<2x1xf32> to vector<2x128xf32>
    %357 = vector.extract_strided_slice %350 {offsets = [0, 1], sizes = [2, 1], strides = [1, 1]} : vector<2x128xf32> to vector<2x1xf32>
    %358 = vector.shape_cast %357 : vector<2x1xf32> to vector<2x1xf32>
    %359 = vector.broadcast %358 : vector<2x1xf32> to vector<2x128xf32>
    %360 = vector.extract_strided_slice %350 {offsets = [0, 2], sizes = [2, 1], strides = [1, 1]} : vector<2x128xf32> to vector<2x1xf32>
    %361 = vector.shape_cast %360 : vector<2x1xf32> to vector<2x1xf32>
    %362 = vector.broadcast %361 : vector<2x1xf32> to vector<2x128xf32>
    %363 = arith.mulf %356, %35 : vector<2x128xf32>
    %364 = arith.mulf %356, %44 : vector<2x128xf32>
    %365 = arith.mulf %356, %53 : vector<2x128xf32>
    %366 = arith.addf %61, %365 : vector<2x128xf32>
    %367 = arith.mulf %359, %38 : vector<2x128xf32>
    %368 = arith.addf %363, %367 : vector<2x128xf32>
    %369 = arith.mulf %359, %47 : vector<2x128xf32>
    %370 = arith.addf %364, %369 : vector<2x128xf32>
    %371 = arith.mulf %359, %56 : vector<2x128xf32>
    %372 = arith.addf %366, %371 : vector<2x128xf32>
    %373 = arith.mulf %362, %41 : vector<2x128xf32>
    %374 = arith.addf %368, %373 : vector<2x128xf32>
    %375 = arith.mulf %362, %50 : vector<2x128xf32>
    %376 = arith.addf %370, %375 : vector<2x128xf32>
    %377 = arith.mulf %362, %59 : vector<2x128xf32>
    %378 = arith.addf %372, %377 : vector<2x128xf32>
    %379 = arith.addf %351, %374 : vector<2x128xf32>
    %380 = arith.negf %379 : vector<2x128xf32>
    %381 = math.exp %380 : vector<2x128xf32>
    %cst_22 = arith.constant 1.000000e+00 : f32
    %382 = vector.broadcast %cst_22 : f32 to vector<2x128xf32>
    %383 = arith.addf %382, %381 : vector<2x128xf32>
    %384 = arith.divf %382, %383 : vector<2x128xf32>
    %385 = arith.addf %352, %376 : vector<2x128xf32>
    %386 = arith.negf %385 : vector<2x128xf32>
    %387 = math.exp %386 : vector<2x128xf32>
    %cst_23 = arith.constant 1.000000e+00 : f32
    %388 = vector.broadcast %cst_23 : f32 to vector<2x128xf32>
    %389 = arith.addf %388, %387 : vector<2x128xf32>
    %390 = arith.divf %388, %389 : vector<2x128xf32>
    %391 = arith.mulf %384, %378 : vector<2x128xf32>
    %392 = arith.addf %353, %391 : vector<2x128xf32>
    %393 = math.tanh %392 : vector<2x128xf32>
    %cst_24 = arith.constant 1.000000e+00 : f32
    %394 = vector.broadcast %cst_24 : f32 to vector<2x128xf32>
    %395 = arith.subf %394, %390 : vector<2x128xf32>
    %396 = arith.mulf %395, %393 : vector<2x128xf32>
    %397 = arith.mulf %390, %350 : vector<2x128xf32>
    %398 = arith.addf %396, %397 : vector<2x128xf32>
    %399 = vector.extract_strided_slice %32 {offsets = [0, 0], sizes = [2, 128], strides = [1, 1]} : vector<2x384xf32> to vector<2x128xf32>
    %400 = vector.extract_strided_slice %32 {offsets = [0, 128], sizes = [2, 128], strides = [1, 1]} : vector<2x384xf32> to vector<2x128xf32>
    %401 = vector.extract_strided_slice %32 {offsets = [0, 256], sizes = [2, 128], strides = [1, 1]} : vector<2x384xf32> to vector<2x128xf32>
    %402 = vector.extract_strided_slice %398 {offsets = [0, 0], sizes = [2, 1], strides = [1, 1]} : vector<2x128xf32> to vector<2x1xf32>
    %403 = vector.shape_cast %402 : vector<2x1xf32> to vector<2x1xf32>
    %404 = vector.broadcast %403 : vector<2x1xf32> to vector<2x128xf32>
    %405 = vector.extract_strided_slice %398 {offsets = [0, 1], sizes = [2, 1], strides = [1, 1]} : vector<2x128xf32> to vector<2x1xf32>
    %406 = vector.shape_cast %405 : vector<2x1xf32> to vector<2x1xf32>
    %407 = vector.broadcast %406 : vector<2x1xf32> to vector<2x128xf32>
    %408 = vector.extract_strided_slice %398 {offsets = [0, 2], sizes = [2, 1], strides = [1, 1]} : vector<2x128xf32> to vector<2x1xf32>
    %409 = vector.shape_cast %408 : vector<2x1xf32> to vector<2x1xf32>
    %410 = vector.broadcast %409 : vector<2x1xf32> to vector<2x128xf32>
    %411 = arith.mulf %404, %35 : vector<2x128xf32>
    %412 = arith.mulf %404, %44 : vector<2x128xf32>
    %413 = arith.mulf %404, %53 : vector<2x128xf32>
    %414 = arith.addf %61, %413 : vector<2x128xf32>
    %415 = arith.mulf %407, %38 : vector<2x128xf32>
    %416 = arith.addf %411, %415 : vector<2x128xf32>
    %417 = arith.mulf %407, %47 : vector<2x128xf32>
    %418 = arith.addf %412, %417 : vector<2x128xf32>
    %419 = arith.mulf %407, %56 : vector<2x128xf32>
    %420 = arith.addf %414, %419 : vector<2x128xf32>
    %421 = arith.mulf %410, %41 : vector<2x128xf32>
    %422 = arith.addf %416, %421 : vector<2x128xf32>
    %423 = arith.mulf %410, %50 : vector<2x128xf32>
    %424 = arith.addf %418, %423 : vector<2x128xf32>
    %425 = arith.mulf %410, %59 : vector<2x128xf32>
    %426 = arith.addf %420, %425 : vector<2x128xf32>
    %427 = arith.addf %399, %422 : vector<2x128xf32>
    %428 = arith.negf %427 : vector<2x128xf32>
    %429 = math.exp %428 : vector<2x128xf32>
    %cst_25 = arith.constant 1.000000e+00 : f32
    %430 = vector.broadcast %cst_25 : f32 to vector<2x128xf32>
    %431 = arith.addf %430, %429 : vector<2x128xf32>
    %432 = arith.divf %430, %431 : vector<2x128xf32>
    %433 = arith.addf %400, %424 : vector<2x128xf32>
    %434 = arith.negf %433 : vector<2x128xf32>
    %435 = math.exp %434 : vector<2x128xf32>
    %cst_26 = arith.constant 1.000000e+00 : f32
    %436 = vector.broadcast %cst_26 : f32 to vector<2x128xf32>
    %437 = arith.addf %436, %435 : vector<2x128xf32>
    %438 = arith.divf %436, %437 : vector<2x128xf32>
    %439 = arith.mulf %432, %426 : vector<2x128xf32>
    %440 = arith.addf %401, %439 : vector<2x128xf32>
    %441 = math.tanh %440 : vector<2x128xf32>
    %cst_27 = arith.constant 1.000000e+00 : f32
    %442 = vector.broadcast %cst_27 : f32 to vector<2x128xf32>
    %443 = arith.subf %442, %438 : vector<2x128xf32>
    %444 = arith.mulf %443, %441 : vector<2x128xf32>
    %445 = arith.mulf %438, %398 : vector<2x128xf32>
    %446 = arith.addf %444, %445 : vector<2x128xf32>
    %447 = vector.extract_strided_slice %110 {offsets = [0, 0], sizes = [1, 128], strides = [1, 1]} : vector<2x128xf32> to vector<1x128xf32>
    %448 = vector.extract_strided_slice %158 {offsets = [0, 0], sizes = [1, 128], strides = [1, 1]} : vector<2x128xf32> to vector<1x128xf32>
    %449 = vector.extract_strided_slice %206 {offsets = [0, 0], sizes = [1, 128], strides = [1, 1]} : vector<2x128xf32> to vector<1x128xf32>
    %450 = vector.extract_strided_slice %254 {offsets = [0, 0], sizes = [1, 128], strides = [1, 1]} : vector<2x128xf32> to vector<1x128xf32>
    %451 = vector.extract_strided_slice %302 {offsets = [0, 0], sizes = [1, 128], strides = [1, 1]} : vector<2x128xf32> to vector<1x128xf32>
    %452 = vector.extract_strided_slice %350 {offsets = [0, 0], sizes = [1, 128], strides = [1, 1]} : vector<2x128xf32> to vector<1x128xf32>
    %453 = vector.extract_strided_slice %398 {offsets = [0, 0], sizes = [1, 128], strides = [1, 1]} : vector<2x128xf32> to vector<1x128xf32>
    %454 = vector.extract_strided_slice %446 {offsets = [0, 0], sizes = [1, 128], strides = [1, 1]} : vector<2x128xf32> to vector<1x128xf32>
    %455 = tpu.concatenate %447, %448, %449, %450, %451, %452, %453, %454 in 0 : vector<1x128xf32>, vector<1x128xf32>, vector<1x128xf32>, vector<1x128xf32>, vector<1x128xf32>, vector<1x128xf32>, vector<1x128xf32>, vector<1x128xf32> -> vector<8x128xf32>
    %456 = vector.extract_strided_slice %110 {offsets = [1, 0], sizes = [1, 128], strides = [1, 1]} : vector<2x128xf32> to vector<1x128xf32>
    %457 = vector.extract_strided_slice %158 {offsets = [1, 0], sizes = [1, 128], strides = [1, 1]} : vector<2x128xf32> to vector<1x128xf32>
    %458 = vector.extract_strided_slice %206 {offsets = [1, 0], sizes = [1, 128], strides = [1, 1]} : vector<2x128xf32> to vector<1x128xf32>
    %459 = vector.extract_strided_slice %254 {offsets = [1, 0], sizes = [1, 128], strides = [1, 1]} : vector<2x128xf32> to vector<1x128xf32>
    %460 = vector.extract_strided_slice %302 {offsets = [1, 0], sizes = [1, 128], strides = [1, 1]} : vector<2x128xf32> to vector<1x128xf32>
    %461 = vector.extract_strided_slice %350 {offsets = [1, 0], sizes = [1, 128], strides = [1, 1]} : vector<2x128xf32> to vector<1x128xf32>
    %462 = vector.extract_strided_slice %398 {offsets = [1, 0], sizes = [1, 128], strides = [1, 1]} : vector<2x128xf32> to vector<1x128xf32>
    %463 = vector.extract_strided_slice %446 {offsets = [1, 0], sizes = [1, 128], strides = [1, 1]} : vector<2x128xf32> to vector<1x128xf32>
    %464 = tpu.concatenate %456, %457, %458, %459, %460, %461, %462, %463 in 0 : vector<1x128xf32>, vector<1x128xf32>, vector<1x128xf32>, vector<1x128xf32>, vector<1x128xf32>, vector<1x128xf32>, vector<1x128xf32>, vector<1x128xf32> -> vector<8x128xf32>
    %465 = tpu.concatenate %455, %464 in 0 : vector<8x128xf32>, vector<8x128xf32> -> vector<16x128xf32>
    %466 = vector.extract_strided_slice %465 {offsets = [0, 0], sizes = [16, 3], strides = [1, 1]} : vector<16x128xf32> to vector<16x3xf32>
    %467 = tpu.iota {dimensions = array<i32: 1>} : vector<16x3xi32>
    %c0_i32 = arith.constant 0 : i32
    %468 = vector.broadcast %c0_i32 : i32 to vector<16x3xi32>
    %469 = arith.cmpi eq, %467, %468 : vector<16x3xi32>
    %470 = arith.negf %466 : vector<16x3xf32>
    %471 = math.exp %470 : vector<16x3xf32>
    %cst_28 = arith.constant 1.000000e+00 : f32
    %472 = vector.broadcast %cst_28 : f32 to vector<16x3xf32>
    %473 = arith.addf %472, %471 : vector<16x3xf32>
    %474 = arith.divf %472, %473 : vector<16x3xf32>
    %475 = math.exp %466 : vector<16x3xf32>
    %476 = arith.select %469, %474, %475 : vector<16x3xi1>, vector<16x3xf32>
    %c0_29 = arith.constant 0 : index
    %c0_30 = arith.constant 0 : index
    %477 = vector.load %arg2[%c0_29, %c0_30] : memref<16x3xf32, #tpu.memory_space<vmem>>, vector<16x3xf32>
    tpu.vector_store %arg2[%c0_29, %c0_30], %476 {strides = array<i32>} : memref<16x3xf32, #tpu.memory_space<vmem>>, vector<16x3xf32>,
    return
  }
}

</mosaic_0001>

<llo_original>
// kernel: gru_bgmm_forward.1
$region0: #{gru_bgmm_forward.1}
  #allocation0 [shape = 'u32[]', space=smem, size = 0x4, offset = 0x4, fixed_abs, tag = 'smem constant byte address 0x4 - core index']
  #allocation1 [shape = 'u32[72,128]{1,0:T(1,128)}', space=vmem, size = 0x9000, scoped, tag = 'internal scratch']
  %s0 = inlined_call_operand.vmem [shape: f32[16,4], index: 0, kind: input, shape index: {}]
  %s1 = inlined_call_operand.vmem [shape: f32[16,384], index: 1, kind: input, shape index: {}]
  %s2 = inlined_call_operand.vmem [shape: f32[16,3], index: 2, kind: output, shape index: {}]
  %s3 = sld [smem:[#allocation0]]
  $region18: #{gru_bgmm_forward.1} parent=0
    _
  %s5 = ssub.s32 1, %s3
  %s6 = scalar_select 0, %s5, %s3
  // Predicated region
  $region2: #{gru_bgmm_forward.1} parent=0 // pred_check
    _
  $region3: #{gru_bgmm_forward.1} parent=0 // pred_check_branch
    %8 = sbr.rel (0) target = $region5
  $region4: #{gru_bgmm_forward.1} parent=0 // pred_region
    _
  $region5: #{gru_bgmm_forward.1} parent=0 // pred_fallthru
    _
  // Predicated region
  $region6: #{gru_bgmm_forward.1} parent=0 // pred_check
    _
  $region7: #{gru_bgmm_forward.1} parent=0 // pred_check_branch
    %10 = sbr.rel (0) target = $region9
  $region8: #{gru_bgmm_forward.1} parent=0 // pred_region
    _
  $region9: #{gru_bgmm_forward.1} parent=0 // pred_fallthru
    _
  %v11 = vld [vmem:[%s1] sm:$0xff]
  %v12 = vld [vmem:[%s1 + $0x8] sm:$0xff]
  %v13 = vld [vmem:[%s1 + $0x10] sm:$0xff]
  %v14 = vld [vmem:[%s1 + $0x18] sm:$0xff]
  %v15 = vld [vmem:[%s0] sm:$0xff]
  %v16 = vld [vmem:[%s0 + $0x8] sm:$0xff]
  %v17 = vperm.slane %v11, 4
  %v18 = vperm.slane %v12, 4
  %v19 = vperm.slane %v13, 4
  %vm20 = vcmask 31744
  %v22 = vsel %vm20, %v15, 0
  %v25 = vsel %vm20, %v16, 0
  %vm27 = vcmask 1043456
  %v29 = vsel %vm27, %v11, 0
  %v32 = vsel %vm27, %v12, 0
  %v35 = vsel %vm27, %v13, 0
  %37 = vmatpush.msra.mxu0 0.0
  %38 = vmatpush.msra.mxu0 0.0
  %39 = vmatpush.msra.mxu0 0.0
  %40 = vmatpush.msra.mxu0 0.0
  %41 = vmatpush.msra.mxu0 0.0
  %42 = vmatpush.msra.mxu0 0.0
  %43 = vmatpush.msra.mxu0 0.0
  %44 = vmatpush.msra.mxu0 0.0
  %45 = vmatpush.msra.mxu0 0.0
  %46 = vmatpush.msra.mxu0 0.0
  %47 = vmatpush.msra.mxu0 0.0
  %48 = vmatpush.msra.mxu0 0.0
  %49 = vmatpush.msra.mxu0 0.0
  %50 = vmatpush.msra.mxu0 0.0
  %51 = vmatpush.msra.mxu0 0.0
  %v52 = vand.u32 %v29, 4294901760
  %53 = vmatpush.msra.mxu0 %v52
  %v54 = vand.u32 %v22, 4294901760
  %v55 = vsub.f32 %v22, %v54
  %v56 = vand.u32 %v55, 4294901760
  %v57 = vsub.f32 %v55, %v56
  %v58 = vand.u32 %v57, 4294901760
  %59 = vmatmul.f32.gmra.mxu0 %v58
  %v60 = vpop.f32.mrf.mxu0
  %v61 = vadd.f32 %v17, %v60
  %v62 = vand.u32 %v25, 4294901760
  %v63 = vsub.f32 %v25, %v62
  %v64 = vand.u32 %v63, 4294901760
  %v65 = vsub.f32 %v63, %v64
  %v66 = vand.u32 %v65, 4294901760
  %67 = vmatmul.f32.gmra.mxu0 %v66
  %v68 = vpop.f32.mrf.mxu0
  %v69 = vadd.f32 %v17, %v68
  %70 = vdwg.mxu0
  %71 = vmatpush.msra.mxu0 0.0
  %72 = vmatpush.msra.mxu0 0.0
  %73 = vmatpush.msra.mxu0 0.0
  %74 = vmatpush.msra.mxu0 0.0
  %75 = vmatpush.msra.mxu0 0.0
  %76 = vmatpush.msra.mxu0 0.0
  %77 = vmatpush.msra.mxu0 0.0
  %78 = vmatpush.msra.mxu0 0.0
  %79 = vmatpush.msra.mxu0 0.0
  %80 = vmatpush.msra.mxu0 0.0
  %81 = vmatpush.msra.mxu0 0.0
  %82 = vmatpush.msra.mxu0 0.0
  %83 = vmatpush.msra.mxu0 0.0
  %84 = vmatpush.msra.mxu0 0.0
  %85 = vmatpush.msra.mxu0 0.0
  %v86 = vand.u32 %v29, 4294901760
  %v87 = vsub.f32 %v29, %v86
  %v88 = vand.u32 %v87, 4294901760
  %v89 = vsub.f32 %v87, %v88
  %v90 = vand.u32 %v89, 4294901760
  %91 = vmatpush.msra.mxu0 %v90
  %v92 = vand.u32 %v22, 4294901760
  %93 = vmatmul.f32.gmra.mxu0 %v92
  %v94 = vpop.f32.mrf.mxu0
  %v95 = vadd.f32 %v61, %v94
  %v96 = vand.u32 %v25, 4294901760
  %97 = vmatmul.f32.gmra.mxu0 %v96
  %v98 = vpop.f32.mrf.mxu0
  %v99 = vadd.f32 %v69, %v98
  %100 = vdwg.mxu0
  %101 = vmatpush.msra.mxu0 0.0
  %102 = vmatpush.msra.mxu0 0.0
  %103 = vmatpush.msra.mxu0 0.0
  %104 = vmatpush.msra.mxu0 0.0
  %105 = vmatpush.msra.mxu0 0.0
  %106 = vmatpush.msra.mxu0 0.0
  %107 = vmatpush.msra.mxu0 0.0
  %108 = vmatpush.msra.mxu0 0.0
  %109 = vmatpush.msra.mxu0 0.0
  %110 = vmatpush.msra.mxu0 0.0
  %111 = vmatpush.msra.mxu0 0.0
  %112 = vmatpush.msra.mxu0 0.0
  %113 = vmatpush.msra.mxu0 0.0
  %114 = vmatpush.msra.mxu0 0.0
  %115 = vmatpush.msra.mxu0 0.0
  %v116 = vand.u32 %v29, 4294901760
  %v117 = vsub.f32 %v29, %v116
  %118 = vmatpush.msra.mxu0 %v117
  %v119 = vand.u32 %v22, 4294901760
  %v120 = vsub.f32 %v22, %v119
  %121 = vmatmul.f32.gmra.mxu0 %v120
  %v122 = vpop.f32.mrf.mxu0
  %v123 = vadd.f32 %v95, %v122
  %v124 = vand.u32 %v25, 4294901760
  %v125 = vsub.f32 %v25, %v124
  %126 = vmatmul.f32.gmra.mxu0 %v125
  %v127 = vpop.f32.mrf.mxu0
  %v128 = vadd.f32 %v99, %v127
  %129 = vdwg.mxu0
  %130 = vmatpush.msra.mxu0 0.0
  %131 = vmatpush.msra.mxu0 0.0
  %132 = vmatpush.msra.mxu0 0.0
  %133 = vmatpush.msra.mxu0 0.0
  %134 = vmatpush.msra.mxu0 0.0
  %135 = vmatpush.msra.mxu0 0.0
  %136 = vmatpush.msra.mxu0 0.0
  %137 = vmatpush.msra.mxu0 0.0
  %138 = vmatpush.msra.mxu0 0.0
  %139 = vmatpush.msra.mxu0 0.0
  %140 = vmatpush.msra.mxu0 0.0
  %141 = vmatpush.msra.mxu0 0.0
  %142 = vmatpush.msra.mxu0 0.0
  %143 = vmatpush.msra.mxu0 0.0
  %144 = vmatpush.msra.mxu0 0.0
  %v145 = vand.u32 %v29, 4294901760
  %146 = vmatpush.msra.mxu0 %v145
  %v147 = vand.u32 %v22, 4294901760
  %v148 = vsub.f32 %v22, %v147
  %v149 = vand.u32 %v148, 4294901760
  %150 = vmatmul.f32.gmra.mxu0 %v149
  %v151 = vpop.f32.mrf.mxu0
  %v152 = vadd.f32 %v123, %v151
  %v153 = vand.u32 %v25, 4294901760
  %v154 = vsub.f32 %v25, %v153
  %v155 = vand.u32 %v154, 4294901760
  %156 = vmatmul.f32.gmra.mxu0 %v155
  %v157 = vpop.f32.mrf.mxu0
  %v158 = vadd.f32 %v128, %v157
  %159 = vdwg.mxu0
  %160 = vmatpush.msra.mxu0 0.0
  %161 = vmatpush.msra.mxu0 0.0
  %162 = vmatpush.msra.mxu0 0.0
  %163 = vmatpush.msra.mxu0 0.0
  %164 = vmatpush.msra.mxu0 0.0
  %165 = vmatpush.msra.mxu0 0.0
  %166 = vmatpush.msra.mxu0 0.0
  %167 = vmatpush.msra.mxu0 0.0
  %168 = vmatpush.msra.mxu0 0.0
  %169 = vmatpush.msra.mxu0 0.0
  %170 = vmatpush.msra.mxu0 0.0
  %171 = vmatpush.msra.mxu0 0.0
  %172 = vmatpush.msra.mxu0 0.0
  %173 = vmatpush.msra.mxu0 0.0
  %174 = vmatpush.msra.mxu0 0.0
  %v175 = vand.u32 %v29, 4294901760
  %v176 = vsub.f32 %v29, %v175
  %v177 = vand.u32 %v176, 4294901760
  %178 = vmatpush.msra.mxu0 %v177
  %v179 = vand.u32 %v22, 4294901760
  %180 = vmatmul.f32.gmra.mxu0 %v179
  %v181 = vpop.f32.mrf.mxu0
  %v182 = vadd.f32 %v152, %v181
  %v183 = vand.u32 %v25, 4294901760
  %184 = vmatmul.f32.gmra.mxu0 %v183
  %v185 = vpop.f32.mrf.mxu0
  %v186 = vadd.f32 %v158, %v185
  %187 = vdwg.mxu0
  %188 = vmatpush.msra.mxu0 0.0
  %189 = vmatpush.msra.mxu0 0.0
  %190 = vmatpush.msra.mxu0 0.0
  %191 = vmatpush.msra.mxu0 0.0
  %192 = vmatpush.msra.mxu0 0.0
  %193 = vmatpush.msra.mxu0 0.0
  %194 = vmatpush.msra.mxu0 0.0
  %195 = vmatpush.msra.mxu0 0.0
  %196 = vmatpush.msra.mxu0 0.0
  %197 = vmatpush.msra.mxu0 0.0
  %198 = vmatpush.msra.mxu0 0.0
  %199 = vmatpush.msra.mxu0 0.0
  %200 = vmatpush.msra.mxu0 0.0
  %201 = vmatpush.msra.mxu0 0.0
  %202 = vmatpush.msra.mxu0 0.0
  %v203 = vand.u32 %v29, 4294901760
  %204 = vmatpush.msra.mxu0 %v203
  %v205 = vand.u32 %v22, 4294901760
  %206 = vmatmul.f32.gmra.mxu0 %v205
  %v207 = vpop.f32.mrf.mxu0
  %v208 = vadd.f32 %v182, %v207
  %v209 = vand.u32 %v25, 4294901760
  %210 = vmatmul.f32.gmra.mxu0 %v209
  %v211 = vpop.f32.mrf.mxu0
  %v212 = vadd.f32 %v186, %v211
  %213 = vdwg.mxu0
  %214 = vmatpush.msra.mxu0 0.0
  %215 = vmatpush.msra.mxu0 0.0
  %216 = vmatpush.msra.mxu0 0.0
  %217 = vmatpush.msra.mxu0 0.0
  %218 = vmatpush.msra.mxu0 0.0
  %219 = vmatpush.msra.mxu0 0.0
  %220 = vmatpush.msra.mxu0 0.0
  %221 = vmatpush.msra.mxu0 0.0
  %222 = vmatpush.msra.mxu0 0.0
  %223 = vmatpush.msra.mxu0 0.0
  %224 = vmatpush.msra.mxu0 0.0
  %225 = vmatpush.msra.mxu0 0.0
  %226 = vmatpush.msra.mxu0 0.0
  %227 = vmatpush.msra.mxu0 0.0
  %228 = vmatpush.msra.mxu0 0.0
  %v229 = vand.u32 %v32, 4294901760
  %230 = vmatpush.msra.mxu0 %v229
  %v231 = vand.u32 %v22, 4294901760
  %v232 = vsub.f32 %v22, %v231
  %v233 = vand.u32 %v232, 4294901760
  %v234 = vsub.f32 %v232, %v233
  %v235 = vand.u32 %v234, 4294901760
  %236 = vmatmul.f32.gmra.mxu0 %v235
  %v237 = vpop.f32.mrf.mxu0
  %v238 = vadd.f32 %v18, %v237
  %v239 = vand.u32 %v25, 4294901760
  %v240 = vsub.f32 %v25, %v239
  %v241 = vand.u32 %v240, 4294901760
  %v242 = vsub.f32 %v240, %v241
  %v243 = vand.u32 %v242, 4294901760
  %244 = vmatmul.f32.gmra.mxu0 %v243
  %v245 = vpop.f32.mrf.mxu0
  %v246 = vadd.f32 %v18, %v245
  %247 = vdwg.mxu0
  %248 = vmatpush.msra.mxu0 0.0
  %249 = vmatpush.msra.mxu0 0.0
  %250 = vmatpush.msra.mxu0 0.0
  %251 = vmatpush.msra.mxu0 0.0
  %252 = vmatpush.msra.mxu0 0.0
  %253 = vmatpush.msra.mxu0 0.0
  %254 = vmatpush.msra.mxu0 0.0
  %255 = vmatpush.msra.mxu0 0.0
  %256 = vmatpush.msra.mxu0 0.0
  %257 = vmatpush.msra.mxu0 0.0
  %258 = vmatpush.msra.mxu0 0.0
  %259 = vmatpush.msra.mxu0 0.0
  %260 = vmatpush.msra.mxu0 0.0
  %261 = vmatpush.msra.mxu0 0.0
  %262 = vmatpush.msra.mxu0 0.0
  %v263 = vand.u32 %v32, 4294901760
  %v264 = vsub.f32 %v32, %v263
  %v265 = vand.u32 %v264, 4294901760
  %v266 = vsub.f32 %v264, %v265
  %v267 = vand.u32 %v266, 4294901760
  %268 = vmatpush.msra.mxu0 %v267
  %v269 = vand.u32 %v22, 4294901760
  %270 = vmatmul.f32.gmra.mxu0 %v269
  %v271 = vpop.f32.mrf.mxu0
  %v272 = vadd.f32 %v238, %v271
  %v273 = vand.u32 %v25, 4294901760
  %274 = vmatmul.f32.gmra.mxu0 %v273
  %v275 = vpop.f32.mrf.mxu0
  %v276 = vadd.f32 %v246, %v275
  %277 = vdwg.mxu0
  %278 = vmatpush.msra.mxu0 0.0
  %279 = vmatpush.msra.mxu0 0.0
  %280 = vmatpush.msra.mxu0 0.0
  %281 = vmatpush.msra.mxu0 0.0
  %282 = vmatpush.msra.mxu0 0.0
  %283 = vmatpush.msra.mxu0 0.0
  %284 = vmatpush.msra.mxu0 0.0
  %285 = vmatpush.msra.mxu0 0.0
  %286 = vmatpush.msra.mxu0 0.0
  %287 = vmatpush.msra.mxu0 0.0
  %288 = vmatpush.msra.mxu0 0.0
  %289 = vmatpush.msra.mxu0 0.0
  %290 = vmatpush.msra.mxu0 0.0
  %291 = vmatpush.msra.mxu0 0.0
  %292 = vmatpush.msra.mxu0 0.0
  %v293 = vand.u32 %v32, 4294901760
  %v294 = vsub.f32 %v32, %v293
  %295 = vmatpush.msra.mxu0 %v294
  %v296 = vand.u32 %v22, 4294901760
  %v297 = vsub.f32 %v22, %v296
  %298 = vmatmul.f32.gmra.mxu0 %v297
  %v299 = vpop.f32.mrf.mxu0
  %v300 = vadd.f32 %v272, %v299
  %v301 = vand.u32 %v25, 4294901760
  %v302 = vsub.f32 %v25, %v301
  %303 = vmatmul.f32.gmra.mxu0 %v302
  %v304 = vpop.f32.mrf.mxu0
  %v305 = vadd.f32 %v276, %v304
  %306 = vdwg.mxu0
  %307 = vmatpush.msra.mxu0 0.0
  %308 = vmatpush.msra.mxu0 0.0
  %309 = vmatpush.msra.mxu0 0.0
  %310 = vmatpush.msra.mxu0 0.0
  %311 = vmatpush.msra.mxu0 0.0
  %312 = vmatpush.msra.mxu0 0.0
  %313 = vmatpush.msra.mxu0 0.0
  %314 = vmatpush.msra.mxu0 0.0
  %315 = vmatpush.msra.mxu0 0.0
  %316 = vmatpush.msra.mxu0 0.0
  %317 = vmatpush.msra.mxu0 0.0
  %318 = vmatpush.msra.mxu0 0.0
  %319 = vmatpush.msra.mxu0 0.0
  %320 = vmatpush.msra.mxu0 0.0
  %321 = vmatpush.msra.mxu0 0.0
  %v322 = vand.u32 %v32, 4294901760
  %323 = vmatpush.msra.mxu0 %v322
  %v324 = vand.u32 %v22, 4294901760
  %v325 = vsub.f32 %v22, %v324
  %v326 = vand.u32 %v325, 4294901760
  %327 = vmatmul.f32.gmra.mxu0 %v326
  %v328 = vpop.f32.mrf.mxu0
  %v329 = vadd.f32 %v300, %v328
  %v330 = vand.u32 %v25, 4294901760
  %v331 = vsub.f32 %v25, %v330
  %v332 = vand.u32 %v331, 4294901760
  %333 = vmatmul.f32.gmra.mxu0 %v332
  %v334 = vpop.f32.mrf.mxu0
  %v335 = vadd.f32 %v305, %v334
  %336 = vdwg.mxu0
  %337 = vmatpush.msra.mxu0 0.0
  %338 = vmatpush.msra.mxu0 0.0
  %339 = vmatpush.msra.mxu0 0.0
  %340 = vmatpush.msra.mxu0 0.0
  %341 = vmatpush.msra.mxu0 0.0
  %342 = vmatpush.msra.mxu0 0.0
  %343 = vmatpush.msra.mxu0 0.0
  %344 = vmatpush.msra.mxu0 0.0
  %345 = vmatpush.msra.mxu0 0.0
  %346 = vmatpush.msra.mxu0 0.0
  %347 = vmatpush.msra.mxu0 0.0
  %348 = vmatpush.msra.mxu0 0.0
  %349 = vmatpush.msra.mxu0 0.0
  %350 = vmatpush.msra.mxu0 0.0
  %351 = vmatpush.msra.mxu0 0.0
  %v352 = vand.u32 %v32, 4294901760
  %v353 = vsub.f32 %v32, %v352
  %v354 = vand.u32 %v353, 4294901760
  %355 = vmatpush.msra.mxu0 %v354
  %v356 = vand.u32 %v22, 4294901760
  %357 = vmatmul.f32.gmra.mxu0 %v356
  %v358 = vpop.f32.mrf.mxu0
  %v359 = vadd.f32 %v329, %v358
  %v360 = vand.u32 %v25, 4294901760
  %361 = vmatmul.f32.gmra.mxu0 %v360
  %v362 = vpop.f32.mrf.mxu0
  %v363 = vadd.f32 %v335, %v362
  %364 = vdwg.mxu0
  %365 = vmatpush.msra.mxu0 0.0
  %366 = vmatpush.msra.mxu0 0.0
  %367 = vmatpush.msra.mxu0 0.0
  %368 = vmatpush.msra.mxu0 0.0
  %369 = vmatpush.msra.mxu0 0.0
  %370 = vmatpush.msra.mxu0 0.0
  %371 = vmatpush.msra.mxu0 0.0
  %372 = vmatpush.msra.mxu0 0.0
  %373 = vmatpush.msra.mxu0 0.0
  %374 = vmatpush.msra.mxu0 0.0
  %375 = vmatpush.msra.mxu0 0.0
  %376 = vmatpush.msra.mxu0 0.0
  %377 = vmatpush.msra.mxu0 0.0
  %378 = vmatpush.msra.mxu0 0.0
  %379 = vmatpush.msra.mxu0 0.0
  %v380 = vand.u32 %v32, 4294901760
  %381 = vmatpush.msra.mxu0 %v380
  %v382 = vand.u32 %v22, 4294901760
  %383 = vmatmul.f32.gmra.mxu0 %v382
  %v384 = vpop.f32.mrf.mxu0
  %v385 = vadd.f32 %v359, %v384
  %v386 = vand.u32 %v25, 4294901760
  %387 = vmatmul.f32.gmra.mxu0 %v386
  %v388 = vpop.f32.mrf.mxu0
  %v389 = vadd.f32 %v363, %v388
  %390 = vdwg.mxu0
  %391 = vmatpush.msra.mxu0 0.0
  %392 = vmatpush.msra.mxu0 0.0
  %393 = vmatpush.msra.mxu0 0.0
  %394 = vmatpush.msra.mxu0 0.0
  %395 = vmatpush.msra.mxu0 0.0
  %396 = vmatpush.msra.mxu0 0.0
  %397 = vmatpush.msra.mxu0 0.0
  %398 = vmatpush.msra.mxu0 0.0
  %399 = vmatpush.msra.mxu0 0.0
  %400 = vmatpush.msra.mxu0 0.0
  %401 = vmatpush.msra.mxu0 0.0
  %402 = vmatpush.msra.mxu0 0.0
  %403 = vmatpush.msra.mxu0 0.0
  %404 = vmatpush.msra.mxu0 0.0
  %405 = vmatpush.msra.mxu0 0.0
  %v406 = vand.u32 %v35, 4294901760
  %407 = vmatpush.msra.mxu0 %v406
  %v408 = vand.u32 %v22, 4294901760
  %v409 = vsub.f32 %v22, %v408
  %v410 = vand.u32 %v409, 4294901760
  %v411 = vsub.f32 %v409, %v410
  %v412 = vand.u32 %v411, 4294901760
  %413 = vmatmul.f32.gmra.mxu0 %v412
  %v414 = vpop.f32.mrf.mxu0
  %v415 = vadd.f32 %v19, %v414
  %v416 = vand.u32 %v25, 4294901760
  %v417 = vsub.f32 %v25, %v416
  %v418 = vand.u32 %v417, 4294901760
  %v419 = vsub.f32 %v417, %v418
  %v420 = vand.u32 %v419, 4294901760
  %421 = vmatmul.f32.gmra.mxu0 %v420
  %v422 = vpop.f32.mrf.mxu0
  %v423 = vadd.f32 %v19, %v422
  %424 = vdwg.mxu0
  %425 = vmatpush.msra.mxu0 0.0
  %426 = vmatpush.msra.mxu0 0.0
  %427 = vmatpush.msra.mxu0 0.0
  %428 = vmatpush.msra.mxu0 0.0
  %429 = vmatpush.msra.mxu0 0.0
  %430 = vmatpush.msra.mxu0 0.0
  %431 = vmatpush.msra.mxu0 0.0
  %432 = vmatpush.msra.mxu0 0.0
  %433 = vmatpush.msra.mxu0 0.0
  %434 = vmatpush.msra.mxu0 0.0
  %435 = vmatpush.msra.mxu0 0.0
  %436 = vmatpush.msra.mxu0 0.0
  %437 = vmatpush.msra.mxu0 0.0
  %438 = vmatpush.msra.mxu0 0.0
  %439 = vmatpush.msra.mxu0 0.0
  %v440 = vand.u32 %v35, 4294901760
  %v441 = vsub.f32 %v35, %v440
  %v442 = vand.u32 %v441, 4294901760
  %v443 = vsub.f32 %v441, %v442
  %v444 = vand.u32 %v443, 4294901760
  %445 = vmatpush.msra.mxu0 %v444
  %v446 = vand.u32 %v22, 4294901760
  %447 = vmatmul.f32.gmra.mxu0 %v446
  %v448 = vpop.f32.mrf.mxu0
  %v449 = vadd.f32 %v415, %v448
  %v450 = vand.u32 %v25, 4294901760
  %451 = vmatmul.f32.gmra.mxu0 %v450
  %v452 = vpop.f32.mrf.mxu0
  %v453 = vadd.f32 %v423, %v452
  %454 = vdwg.mxu0
  %455 = vmatpush.msra.mxu0 0.0
  %456 = vmatpush.msra.mxu0 0.0
  %457 = vmatpush.msra.mxu0 0.0
  %458 = vmatpush.msra.mxu0 0.0
  %459 = vmatpush.msra.mxu0 0.0
  %460 = vmatpush.msra.mxu0 0.0
  %461 = vmatpush.msra.mxu0 0.0
  %462 = vmatpush.msra.mxu0 0.0
  %463 = vmatpush.msra.mxu0 0.0
  %464 = vmatpush.msra.mxu0 0.0
  %465 = vmatpush.msra.mxu0 0.0
  %466 = vmatpush.msra.mxu0 0.0
  %467 = vmatpush.msra.mxu0 0.0
  %468 = vmatpush.msra.mxu0 0.0
  %469 = vmatpush.msra.mxu0 0.0
  %v470 = vand.u32 %v35, 4294901760
  %v471 = vsub.f32 %v35, %v470
  %472 = vmatpush.msra.mxu0 %v471
  %v473 = vand.u32 %v22, 4294901760
  %v474 = vsub.f32 %v22, %v473
  %475 = vmatmul.f32.gmra.mxu0 %v474
  %v476 = vpop.f32.mrf.mxu0
  %v477 = vadd.f32 %v449, %v476
  %v478 = vand.u32 %v25, 4294901760
  %v479 = vsub.f32 %v25, %v478
  %480 = vmatmul.f32.gmra.mxu0 %v479
  %v481 = vpop.f32.mrf.mxu0
  %v482 = vadd.f32 %v453, %v481
  %483 = vdwg.mxu0
  %484 = vmatpush.msra.mxu0 0.0
  %485 = vmatpush.msra.mxu0 0.0
  %486 = vmatpush.msra.mxu0 0.0
  %487 = vmatpush.msra.mxu0 0.0
  %488 = vmatpush.msra.mxu0 0.0
  %489 = vmatpush.msra.mxu0 0.0
  %490 = vmatpush.msra.mxu0 0.0
  %491 = vmatpush.msra.mxu0 0.0
  %492 = vmatpush.msra.mxu0 0.0
  %493 = vmatpush.msra.mxu0 0.0
  %494 = vmatpush.msra.mxu0 0.0
  %495 = vmatpush.msra.mxu0 0.0
  %496 = vmatpush.msra.mxu0 0.0
  %497 = vmatpush.msra.mxu0 0.0
  %498 = vmatpush.msra.mxu0 0.0
  %v499 = vand.u32 %v35, 4294901760
  %500 = vmatpush.msra.mxu0 %v499
  %v501 = vand.u32 %v22, 4294901760
  %v502 = vsub.f32 %v22, %v501
  %v503 = vand.u32 %v502, 4294901760
  %504 = vmatmul.f32.gmra.mxu0 %v503
  %v505 = vpop.f32.mrf.mxu0
  %v506 = vadd.f32 %v477, %v505
  %v507 = vand.u32 %v25, 4294901760
  %v508 = vsub.f32 %v25, %v507
  %v509 = vand.u32 %v508, 4294901760
  %510 = vmatmul.f32.gmra.mxu0 %v509
  %v511 = vpop.f32.mrf.mxu0
  %v512 = vadd.f32 %v482, %v511
  %513 = vdwg.mxu0
  %514 = vmatpush.msra.mxu0 0.0
  %515 = vmatpush.msra.mxu0 0.0
  %516 = vmatpush.msra.mxu0 0.0
  %517 = vmatpush.msra.mxu0 0.0
  %518 = vmatpush.msra.mxu0 0.0
  %519 = vmatpush.msra.mxu0 0.0
  %520 = vmatpush.msra.mxu0 0.0
  %521 = vmatpush.msra.mxu0 0.0
  %522 = vmatpush.msra.mxu0 0.0
  %523 = vmatpush.msra.mxu0 0.0
  %524 = vmatpush.msra.mxu0 0.0
  %525 = vmatpush.msra.mxu0 0.0
  %526 = vmatpush.msra.mxu0 0.0
  %527 = vmatpush.msra.mxu0 0.0
  %528 = vmatpush.msra.mxu0 0.0
  %v529 = vand.u32 %v35, 4294901760
  %v530 = vsub.f32 %v35, %v529
  %v531 = vand.u32 %v530, 4294901760
  %532 = vmatpush.msra.mxu0 %v531
  %v533 = vand.u32 %v22, 4294901760
  %534 = vmatmul.f32.gmra.mxu0 %v533
  %v535 = vpop.f32.mrf.mxu0
  %v536 = vadd.f32 %v506, %v535
  %v537 = vand.u32 %v25, 4294901760
  %538 = vmatmul.f32.gmra.mxu0 %v537
  %v539 = vpop.f32.mrf.mxu0
  %v540 = vadd.f32 %v512, %v539
  %541 = vdwg.mxu0
  %542 = vmatpush.msra.mxu0 0.0
  %543 = vmatpush.msra.mxu0 0.0
  %544 = vmatpush.msra.mxu0 0.0
  %545 = vmatpush.msra.mxu0 0.0
  %546 = vmatpush.msra.mxu0 0.0
  %547 = vmatpush.msra.mxu0 0.0
  %548 = vmatpush.msra.mxu0 0.0
  %549 = vmatpush.msra.mxu0 0.0
  %550 = vmatpush.msra.mxu0 0.0
  %551 = vmatpush.msra.mxu0 0.0
  %552 = vmatpush.msra.mxu0 0.0
  %553 = vmatpush.msra.mxu0 0.0
  %554 = vmatpush.msra.mxu0 0.0
  %555 = vmatpush.msra.mxu0 0.0
  %556 = vmatpush.msra.mxu0 0.0
  %v557 = vand.u32 %v35, 4294901760
  %558 = vmatpush.msra.mxu0 %v557
  %v559 = vand.u32 %v22, 4294901760
  %560 = vmatmul.f32.gmra.mxu0 %v559
  %v561 = vpop.f32.mrf.mxu0
  %v562 = vadd.f32 %v536, %v561
  %v563 = vand.u32 %v25, 4294901760
  %564 = vmatmul.f32.gmra.mxu0 %v563
  %v565 = vpop.f32.mrf.mxu0
  %v566 = vadd.f32 %v540, %v565
  %567 = vdwg.mxu0
  %v571 = vrot.slane %v212, 7
  %v572 = vrot.slane %v389, 7
  %v573 = vrot.slane %v566, 7
  %vm577 = vcmask 1040384
  %v578 = vsel %vm577, %v208, %v571
  %v579 = vsel %vm577, %v385, %v572
  %v580 = vsel %vm577, %v562, %v573
  %v584 = vrot.slane %v208, 1
  %v585 = vrot.slane %v385, 1
  %v586 = vrot.slane %v562, 1
  %v590 = vsel %vm577, %v584, %v212
  %v591 = vsel %vm577, %v585, %v389
  %v592 = vsel %vm577, %v586, %v566
  %v593 = vrot.slane %v208, 2
  %v594 = vrot.slane %v385, 2
  %v595 = vrot.slane %v562, 2
  %v599 = vrot.slane %v212, 1
  %v600 = vrot.slane %v389, 1
  %v601 = vrot.slane %v566, 1
  %v605 = vsel %vm577, %v593, %v599
  %v606 = vsel %vm577, %v594, %v600
  %v607 = vsel %vm577, %v595, %v601
  %v608 = vrot.slane %v208, 3
  %v609 = vrot.slane %v385, 3
  %v610 = vrot.slane %v562, 3
  %v614 = vrot.slane %v212, 2
  %v615 = vrot.slane %v389, 2
  %v616 = vrot.slane %v566, 2
  %v620 = vsel %vm577, %v608, %v614
  %v621 = vsel %vm577, %v609, %v615
  %v622 = vsel %vm577, %v610, %v616
  %v623 = vrot.slane %v208, 4
  %v624 = vrot.slane %v385, 4
  %v625 = vrot.slane %v562, 4
  %v629 = vrot.slane %v212, 3
  %v630 = vrot.slane %v389, 3
  %v631 = vrot.slane %v566, 3
  %v635 = vsel %vm577, %v623, %v629
  %v636 = vsel %vm577, %v624, %v630
  %v637 = vsel %vm577, %v625, %v631
  %v638 = vrot.slane %v208, 5
  %v639 = vrot.slane %v385, 5
  %v640 = vrot.slane %v562, 5
  %v644 = vrot.slane %v212, 4
  %v645 = vrot.slane %v389, 4
  %v646 = vrot.slane %v566, 4
  %v650 = vsel %vm577, %v638, %v644
  %v651 = vsel %vm577, %v639, %v645
  %v652 = vsel %vm577, %v640, %v646
  %v653 = vrot.slane %v208, 6
  %v654 = vrot.slane %v385, 6
  %v655 = vrot.slane %v562, 6
  %v659 = vrot.slane %v212, 5
  %v660 = vrot.slane %v389, 5
  %v661 = vrot.slane %v566, 5
  %v665 = vsel %vm577, %v653, %v659
  %v666 = vsel %vm577, %v654, %v660
  %v667 = vsel %vm577, %v655, %v661
  %v668 = vrot.slane %v208, 7
  %v669 = vrot.slane %v385, 7
  %v670 = vrot.slane %v562, 7
  %v674 = vrot.slane %v212, 6
  %v675 = vrot.slane %v389, 6
  %v676 = vrot.slane %v566, 6
  %v680 = vsel %vm577, %v668, %v674
  %v681 = vsel %vm577, %v669, %v675
  %v682 = vsel %vm577, %v670, %v676
  %v683 = vperm.slane %v11, 5
  %v684 = vperm.slane %v11, 6
  %v685 = vperm.slane %v11, 7
  %v686 = vperm.slane %v12, 5
  %v687 = vperm.slane %v12, 6
  %v688 = vperm.slane %v12, 7
  %v689 = vperm.slane %v13, 5
  %v690 = vperm.slane %v13, 6
  %v691 = vperm.slane %v13, 7
  %v692 = vperm.slane %v14, 0
  %v693 = vmul.f32 %v683, 0.0
  %v694 = vmul.f32 %v686, 0.0
  %v695 = vmul.f32 %v689, 0.0
  %v696 = vadd.f32 %v692, %v695
  %v697 = vmul.f32 %v684, 0.0
  %v698 = vadd.f32 %v693, %v697
  %v699 = vmul.f32 %v687, 0.0
  %v700 = vadd.f32 %v694, %v699
  %v701 = vmul.f32 %v690, 0.0
  %v702 = vadd.f32 %v696, %v701
  %v703 = vmul.f32 %v685, 0.0
  %v704 = vadd.f32 %v698, %v703
  %v705 = vmul.f32 %v688, 0.0
  %v706 = vadd.f32 %v700, %v705
  %v707 = vmul.f32 %v691, 0.0
  %v708 = vadd.f32 %v702, %v707
  %v709 = vadd.f32 %v578, %v704
  %v710 = vxor.u32 %v709, 2147483648
  %v711 = vmul.f32 %v710, 1.442695
  %v712 = vpow.pop %v711
  %v713 = vadd.f32 %v712, 1.0
  %v714 = vrcp.pop %v713
  %v715 = vmul.f32 %v713, %v714
  %v716 = vsub.f32 1.0, %v715
  %v717 = vmul.f32 %v714, %v716
  %v718 = vadd.f32 %v714, %v717
  %vm719 = vweird.f32 %v713
  %vm720 = vweird.f32 %v714
  %vm721 = vmor %vm719, %vm720
  %v722 = vsel %vm721, %v714, %v718
  %v723 = vand.u32 2147483647, %v713
  %vm724 = vcmp.eq.f32.partialorder %v723, 8.507059e+37
  %v725 = vand.u32 %v713, 2147483648
  %v726 = vor.u32 1.1754944e-38, %v725
  %v727 = vsel %vm724, %v726, %v722
  %v728 = vmul.f32 1.0, %v727
  %v729 = vadd.f32 %v579, %v706
  %v730 = vxor.u32 %v729, 2147483648
  %v731 = vmul.f32 %v730, 1.442695
  %v732 = vpow.pop %v731
  %v733 = vadd.f32 %v732, 1.0
  %v734 = vrcp.pop %v733
  %v735 = vmul.f32 %v733, %v734
  %v736 = vsub.f32 1.0, %v735
  %v737 = vmul.f32 %v734, %v736
  %v738 = vadd.f32 %v734, %v737
  %vm739 = vweird.f32 %v733
  %vm740 = vweird.f32 %v734
  %vm741 = vmor %vm739, %vm740
  %v742 = vsel %vm741, %v734, %v738
  %v743 = vand.u32 2147483647, %v733
  %vm744 = vcmp.eq.f32.partialorder %v743, 8.507059e+37
  %v745 = vand.u32 %v733, 2147483648
  %v746 = vor.u32 1.1754944e-38, %v745
  %v747 = vsel %vm744, %v746, %v742
  %v748 = vmul.f32 1.0, %v747
  %v749 = vmul.f32 %v728, %v708
  %v750 = vadd.f32 %v580, %v749
  %v751 = vtanh.pop %v750
  %v752 = vsub.f32 1.0, %v748
  %v753 = vmul.f32 %v752, %v751
  %v754 = vmul.f32 %v748, 0.0
  %v755 = vadd.f32 %v753, %v754
  %757 = vset.pattern.permute.xlu0 0
  %758 = vperm.xlu0 %757, %v755
  %v759 = vpop.permute.xlu0 %758
  %761 = vset.pattern.permute.xlu0 1
  %762 = vperm.xlu0 %761, %v755
  %v763 = vpop.permute.xlu0 %762
  %765 = vset.pattern.permute.xlu0 2
  %766 = vperm.xlu0 %765, %v755
  %v767 = vpop.permute.xlu0 %766
  %v769 = vmul.f32 %v759, %v683
  %v770 = vmul.f32 %v759, %v686
  %v771 = vmul.f32 %v759, %v689
  %v772 = vadd.f32 %v692, %v771
  %v773 = vmul.f32 %v763, %v684
  %v774 = vadd.f32 %v769, %v773
  %v775 = vmul.f32 %v763, %v687
  %v776 = vadd.f32 %v770, %v775
  %v777 = vmul.f32 %v763, %v690
  %v778 = vadd.f32 %v772, %v777
  %v779 = vmul.f32 %v767, %v685
  %v780 = vadd.f32 %v774, %v779
  %v781 = vmul.f32 %v767, %v688
  %v782 = vadd.f32 %v776, %v781
  %v783 = vmul.f32 %v767, %v691
  %v784 = vadd.f32 %v778, %v783
  %v785 = vadd.f32 %v590, %v780
  %v786 = vxor.u32 %v785, 2147483648
  %v787 = vmul.f32 %v786, 1.442695
  %v788 = vpow.pop %v787
  %v789 = vadd.f32 %v788, 1.0
  %v790 = vrcp.pop %v789
  %v791 = vmul.f32 %v789, %v790
  %v792 = vsub.f32 1.0, %v791
  %v793 = vmul.f32 %v790, %v792
  %v794 = vadd.f32 %v790, %v793
  %vm795 = vweird.f32 %v789
  %vm796 = vweird.f32 %v790
  %vm797 = vmor %vm795, %vm796
  %v798 = vsel %vm797, %v790, %v794
  %v799 = vand.u32 2147483647, %v789
  %vm800 = vcmp.eq.f32.partialorder %v799, 8.507059e+37
  %v801 = vand.u32 %v789, 2147483648
  %v802 = vor.u32 1.1754944e-38, %v801
  %v803 = vsel %vm800, %v802, %v798
  %v804 = vmul.f32 1.0, %v803
  %v805 = vadd.f32 %v591, %v782
  %v806 = vxor.u32 %v805, 2147483648
  %v807 = vmul.f32 %v806, 1.442695
  %v808 = vpow.pop %v807
  %v809 = vadd.f32 %v808, 1.0
  %v810 = vrcp.pop %v809
  %v811 = vmul.f32 %v809, %v810
  %v812 = vsub.f32 1.0, %v811
  %v813 = vmul.f32 %v810, %v812
  %v814 = vadd.f32 %v810, %v813
  %vm815 = vweird.f32 %v809
  %vm816 = vweird.f32 %v810
  %vm817 = vmor %vm815, %vm816
  %v818 = vsel %vm817, %v810, %v814
  %v819 = vand.u32 2147483647, %v809
  %vm820 = vcmp.eq.f32.partialorder %v819, 8.507059e+37
  %v821 = vand.u32 %v809, 2147483648
  %v822 = vor.u32 1.1754944e-38, %v821
  %v823 = vsel %vm820, %v822, %v818
  %v824 = vmul.f32 1.0, %v823
  %v825 = vmul.f32 %v804, %v784
  %v826 = vadd.f32 %v592, %v825
  %v827 = vtanh.pop %v826
  %v828 = vsub.f32 1.0, %v824
  %v829 = vmul.f32 %v828, %v827
  %v830 = vmul.f32 %v824, %v755
  %v831 = vadd.f32 %v829, %v830
  %833 = vset.pattern.permute.xlu0 0
  %834 = vperm.xlu0 %833, %v831
  %v835 = vpop.permute.xlu0 %834
  %837 = vset.pattern.permute.xlu0 1
  %838 = vperm.xlu0 %837, %v831
  %v839 = vpop.permute.xlu0 %838
  %841 = vset.pattern.permute.xlu0 2
  %842 = vperm.xlu0 %841, %v831
  %v843 = vpop.permute.xlu0 %842
  %v845 = vmul.f32 %v835, %v683
  %v846 = vmul.f32 %v835, %v686
  %v847 = vmul.f32 %v835, %v689
  %v848 = vadd.f32 %v692, %v847
  %v849 = vmul.f32 %v839, %v684
  %v850 = vadd.f32 %v845, %v849
  %v851 = vmul.f32 %v839, %v687
  %v852 = vadd.f32 %v846, %v851
  %v853 = vmul.f32 %v839, %v690
  %v854 = vadd.f32 %v848, %v853
  %v855 = vmul.f32 %v843, %v685
  %v856 = vadd.f32 %v850, %v855
  %v857 = vmul.f32 %v843, %v688
  %v858 = vadd.f32 %v852, %v857
  %v859 = vmul.f32 %v843, %v691
  %v860 = vadd.f32 %v854, %v859
  %v861 = vadd.f32 %v605, %v856
  %v862 = vxor.u32 %v861, 2147483648
  %v863 = vmul.f32 %v862, 1.442695
  %v864 = vpow.pop %v863
  %v865 = vadd.f32 %v864, 1.0
  %v866 = vrcp.pop %v865
  %v867 = vmul.f32 %v865, %v866
  %v868 = vsub.f32 1.0, %v867
  %v869 = vmul.f32 %v866, %v868
  %v870 = vadd.f32 %v866, %v869
  %vm871 = vweird.f32 %v865
  %vm872 = vweird.f32 %v866
  %vm873 = vmor %vm871, %vm872
  %v874 = vsel %vm873, %v866, %v870
  %v875 = vand.u32 2147483647, %v865
  %vm876 = vcmp.eq.f32.partialorder %v875, 8.507059e+37
  %v877 = vand.u32 %v865, 2147483648
  %v878 = vor.u32 1.1754944e-38, %v877
  %v879 = vsel %vm876, %v878, %v874
  %v880 = vmul.f32 1.0, %v879
  %v881 = vadd.f32 %v606, %v858
  %v882 = vxor.u32 %v881, 2147483648
  %v883 = vmul.f32 %v882, 1.442695
  %v884 = vpow.pop %v883
  %v885 = vadd.f32 %v884, 1.0
  %v886 = vrcp.pop %v885
  %v887 = vmul.f32 %v885, %v886
  %v888 = vsub.f32 1.0, %v887
  %v889 = vmul.f32 %v886, %v888
  %v890 = vadd.f32 %v886, %v889
  %vm891 = vweird.f32 %v885
  %vm892 = vweird.f32 %v886
  %vm893 = vmor %vm891, %vm892
  %v894 = vsel %vm893, %v886, %v890
  %v895 = vand.u32 2147483647, %v885
  %vm896 = vcmp.eq.f32.partialorder %v895, 8.507059e+37
  %v897 = vand.u32 %v885, 2147483648
  %v898 = vor.u32 1.1754944e-38, %v897
  %v899 = vsel %vm896, %v898, %v894
  %v900 = vmul.f32 1.0, %v899
  %v901 = vmul.f32 %v880, %v860
  %v902 = vadd.f32 %v607, %v901
  %v903 = vtanh.pop %v902
  %v904 = vsub.f32 1.0, %v900
  %v905 = vmul.f32 %v904, %v903
  %v906 = vmul.f32 %v900, %v831
  %v907 = vadd.f32 %v905, %v906
  %909 = vset.pattern.permute.xlu0 0
  %910 = vperm.xlu0 %909, %v907
  %v911 = vpop.permute.xlu0 %910
  %913 = vset.pattern.permute.xlu0 1
  %914 = vperm.xlu0 %913, %v907
  %v915 = vpop.permute.xlu0 %914
  %917 = vset.pattern.permute.xlu0 2
  %918 = vperm.xlu0 %917, %v907
  %v919 = vpop.permute.xlu0 %918
  %v921 = vmul.f32 %v911, %v683
  %v922 = vmul.f32 %v911, %v686
  %v923 = vmul.f32 %v911, %v689
  %v924 = vadd.f32 %v692, %v923
  %v925 = vmul.f32 %v915, %v684
  %v926 = vadd.f32 %v921, %v925
  %v927 = vmul.f32 %v915, %v687
  %v928 = vadd.f32 %v922, %v927
  %v929 = vmul.f32 %v915, %v690
  %v930 = vadd.f32 %v924, %v929
  %v931 = vmul.f32 %v919, %v685
  %v932 = vadd.f32 %v926, %v931
  %v933 = vmul.f32 %v919, %v688
  %v934 = vadd.f32 %v928, %v933
  %v935 = vmul.f32 %v919, %v691
  %v936 = vadd.f32 %v930, %v935
  %v937 = vadd.f32 %v620, %v932
  %v938 = vxor.u32 %v937, 2147483648
  %v939 = vmul.f32 %v938, 1.442695
  %v940 = vpow.pop %v939
  %v941 = vadd.f32 %v940, 1.0
  %v942 = vrcp.pop %v941
  %v943 = vmul.f32 %v941, %v942
  %v944 = vsub.f32 1.0, %v943
  %v945 = vmul.f32 %v942, %v944
  %v946 = vadd.f32 %v942, %v945
  %vm947 = vweird.f32 %v941
  %vm948 = vweird.f32 %v942
  %vm949 = vmor %vm947, %vm948
  %v950 = vsel %vm949, %v942, %v946
  %v951 = vand.u32 2147483647, %v941
  %vm952 = vcmp.eq.f32.partialorder %v951, 8.507059e+37
  %v953 = vand.u32 %v941, 2147483648
  %v954 = vor.u32 1.1754944e-38, %v953
  %v955 = vsel %vm952, %v954, %v950
  %v956 = vmul.f32 1.0, %v955
  %v957 = vadd.f32 %v621, %v934
  %v958 = vxor.u32 %v957, 2147483648
  %v959 = vmul.f32 %v958, 1.442695
  %v960 = vpow.pop %v959
  %v961 = vadd.f32 %v960, 1.0
  %v962 = vrcp.pop %v961
  %v963 = vmul.f32 %v961, %v962
  %v964 = vsub.f32 1.0, %v963
  %v965 = vmul.f32 %v962, %v964
  %v966 = vadd.f32 %v962, %v965
  %vm967 = vweird.f32 %v961
  %vm968 = vweird.f32 %v962
  %vm969 = vmor %vm967, %vm968
  %v970 = vsel %vm969, %v962, %v966
  %v971 = vand.u32 2147483647, %v961
  %vm972 = vcmp.eq.f32.partialorder %v971, 8.507059e+37
  %v973 = vand.u32 %v961, 2147483648
  %v974 = vor.u32 1.1754944e-38, %v973
  %v975 = vsel %vm972, %v974, %v970
  %v976 = vmul.f32 1.0, %v975
  %v977 = vmul.f32 %v956, %v936
  %v978 = vadd.f32 %v622, %v977
  %v979 = vtanh.pop %v978
  %v980 = vsub.f32 1.0, %v976
  %v981 = vmul.f32 %v980, %v979
  %v982 = vmul.f32 %v976, %v907
  %v983 = vadd.f32 %v981, %v982
  %985 = vset.pattern.permute.xlu0 0
  %986 = vperm.xlu0 %985, %v983
  %v987 = vpop.permute.xlu0 %986
  %989 = vset.pattern.permute.xlu0 1
  %990 = vperm.xlu0 %989, %v983
  %v991 = vpop.permute.xlu0 %990
  %993 = vset.pattern.permute.xlu0 2
  %994 = vperm.xlu0 %993, %v983
  %v995 = vpop.permute.xlu0 %994
  %v997 = vmul.f32 %v987, %v683
  %v998 = vmul.f32 %v987, %v686
  %v999 = vmul.f32 %v987, %v689
  %v1000 = vadd.f32 %v692, %v999
  %v1001 = vmul.f32 %v991, %v684
  %v1002 = vadd.f32 %v997, %v1001
  %v1003 = vmul.f32 %v991, %v687
  %v1004 = vadd.f32 %v998, %v1003
  %v1005 = vmul.f32 %v991, %v690
  %v1006 = vadd.f32 %v1000, %v1005
  %v1007 = vmul.f32 %v995, %v685
  %v1008 = vadd.f32 %v1002, %v1007
  %v1009 = vmul.f32 %v995, %v688
  %v1010 = vadd.f32 %v1004, %v1009
  %v1011 = vmul.f32 %v995, %v691
  %v1012 = vadd.f32 %v1006, %v1011
  %v1013 = vadd.f32 %v635, %v1008
  %v1014 = vxor.u32 %v1013, 2147483648
  %v1015 = vmul.f32 %v1014, 1.442695
  %v1016 = vpow.pop %v1015
  %v1017 = vadd.f32 %v1016, 1.0
  %v1018 = vrcp.pop %v1017
  %v1019 = vmul.f32 %v1017, %v1018
  %v1020 = vsub.f32 1.0, %v1019
  %v1021 = vmul.f32 %v1018, %v1020
  %v1022 = vadd.f32 %v1018, %v1021
  %vm1023 = vweird.f32 %v1017
  %vm1024 = vweird.f32 %v1018
  %vm1025 = vmor %vm1023, %vm1024
  %v1026 = vsel %vm1025, %v1018, %v1022
  %v1027 = vand.u32 2147483647, %v1017
  %vm1028 = vcmp.eq.f32.partialorder %v1027, 8.507059e+37
  %v1029 = vand.u32 %v1017, 2147483648
  %v1030 = vor.u32 1.1754944e-38, %v1029
  %v1031 = vsel %vm1028, %v1030, %v1026
  %v1032 = vmul.f32 1.0, %v1031
  %v1033 = vadd.f32 %v636, %v1010
  %v1034 = vxor.u32 %v1033, 2147483648
  %v1035 = vmul.f32 %v1034, 1.442695
  %v1036 = vpow.pop %v1035
  %v1037 = vadd.f32 %v1036, 1.0
  %v1038 = vrcp.pop %v1037
  %v1039 = vmul.f32 %v1037, %v1038
  %v1040 = vsub.f32 1.0, %v1039
  %v1041 = vmul.f32 %v1038, %v1040
  %v1042 = vadd.f32 %v1038, %v1041
  %vm1043 = vweird.f32 %v1037
  %vm1044 = vweird.f32 %v1038
  %vm1045 = vmor %vm1043, %vm1044
  %v1046 = vsel %vm1045, %v1038, %v1042
  %v1047 = vand.u32 2147483647, %v1037
  %vm1048 = vcmp.eq.f32.partialorder %v1047, 8.507059e+37
  %v1049 = vand.u32 %v1037, 2147483648
  %v1050 = vor.u32 1.1754944e-38, %v1049
  %v1051 = vsel %vm1048, %v1050, %v1046
  %v1052 = vmul.f32 1.0, %v1051
  %v1053 = vmul.f32 %v1032, %v1012
  %v1054 = vadd.f32 %v637, %v1053
  %v1055 = vtanh.pop %v1054
  %v1056 = vsub.f32 1.0, %v1052
  %v1057 = vmul.f32 %v1056, %v1055
  %v1058 = vmul.f32 %v1052, %v983
  %v1059 = vadd.f32 %v1057, %v1058
  %1061 = vset.pattern.permute.xlu0 0
  %1062 = vperm.xlu0 %1061, %v1059
  %v1063 = vpop.permute.xlu0 %1062
  %1065 = vset.pattern.permute.xlu0 1
  %1066 = vperm.xlu0 %1065, %v1059
  %v1067 = vpop.permute.xlu0 %1066
  %1069 = vset.pattern.permute.xlu0 2
  %1070 = vperm.xlu0 %1069, %v1059
  %v1071 = vpop.permute.xlu0 %1070
  %v1073 = vmul.f32 %v1063, %v683
  %v1074 = vmul.f32 %v1063, %v686
  %v1075 = vmul.f32 %v1063, %v689
  %v1076 = vadd.f32 %v692, %v1075
  %v1077 = vmul.f32 %v1067, %v684
  %v1078 = vadd.f32 %v1073, %v1077
  %v1079 = vmul.f32 %v1067, %v687
  %v1080 = vadd.f32 %v1074, %v1079
  %v1081 = vmul.f32 %v1067, %v690
  %v1082 = vadd.f32 %v1076, %v1081
  %v1083 = vmul.f32 %v1071, %v685
  %v1084 = vadd.f32 %v1078, %v1083
  %v1085 = vmul.f32 %v1071, %v688
  %v1086 = vadd.f32 %v1080, %v1085
  %v1087 = vmul.f32 %v1071, %v691
  %v1088 = vadd.f32 %v1082, %v1087
  %v1089 = vadd.f32 %v650, %v1084
  %v1090 = vxor.u32 %v1089, 2147483648
  %v1091 = vmul.f32 %v1090, 1.442695
  %v1092 = vpow.pop %v1091
  %v1093 = vadd.f32 %v1092, 1.0
  %v1094 = vrcp.pop %v1093
  %v1095 = vmul.f32 %v1093, %v1094
  %v1096 = vsub.f32 1.0, %v1095
  %v1097 = vmul.f32 %v1094, %v1096
  %v1098 = vadd.f32 %v1094, %v1097
  %vm1099 = vweird.f32 %v1093
  %vm1100 = vweird.f32 %v1094
  %vm1101 = vmor %vm1099, %vm1100
  %v1102 = vsel %vm1101, %v1094, %v1098
  %v1103 = vand.u32 2147483647, %v1093
  %vm1104 = vcmp.eq.f32.partialorder %v1103, 8.507059e+37
  %v1105 = vand.u32 %v1093, 2147483648
  %v1106 = vor.u32 1.1754944e-38, %v1105
  %v1107 = vsel %vm1104, %v1106, %v1102
  %v1108 = vmul.f32 1.0, %v1107
  %v1109 = vadd.f32 %v651, %v1086
  %v1110 = vxor.u32 %v1109, 2147483648
  %v1111 = vmul.f32 %v1110, 1.442695
  %v1112 = vpow.pop %v1111
  %v1113 = vadd.f32 %v1112, 1.0
  %v1114 = vrcp.pop %v1113
  %v1115 = vmul.f32 %v1113, %v1114
  %v1116 = vsub.f32 1.0, %v1115
  %v1117 = vmul.f32 %v1114, %v1116
  %v1118 = vadd.f32 %v1114, %v1117
  %vm1119 = vweird.f32 %v1113
  %vm1120 = vweird.f32 %v1114
  %vm1121 = vmor %vm1119, %vm1120
  %v1122 = vsel %vm1121, %v1114, %v1118
  %v1123 = vand.u32 2147483647, %v1113
  %vm1124 = vcmp.eq.f32.partialorder %v1123, 8.507059e+37
  %v1125 = vand.u32 %v1113, 2147483648
  %v1126 = vor.u32 1.1754944e-38, %v1125
  %v1127 = vsel %vm1124, %v1126, %v1122
  %v1128 = vmul.f32 1.0, %v1127
  %v1129 = vmul.f32 %v1108, %v1088
  %v1130 = vadd.f32 %v652, %v1129
  %v1131 = vtanh.pop %v1130
  %v1132 = vsub.f32 1.0, %v1128
  %v1133 = vmul.f32 %v1132, %v1131
  %v1134 = vmul.f32 %v1128, %v1059
  %v1135 = vadd.f32 %v1133, %v1134
  %1137 = vset.pattern.permute.xlu0 0
  %1138 = vperm.xlu0 %1137, %v1135
  %v1139 = vpop.permute.xlu0 %1138
  %1141 = vset.pattern.permute.xlu0 1
  %1142 = vperm.xlu0 %1141, %v1135
  %v1143 = vpop.permute.xlu0 %1142
  %1145 = vset.pattern.permute.xlu0 2
  %1146 = vperm.xlu0 %1145, %v1135
  %v1147 = vpop.permute.xlu0 %1146
  %v1149 = vmul.f32 %v1139, %v683
  %v1150 = vmul.f32 %v1139, %v686
  %v1151 = vmul.f32 %v1139, %v689
  %v1152 = vadd.f32 %v692, %v1151
  %v1153 = vmul.f32 %v1143, %v684
  %v1154 = vadd.f32 %v1149, %v1153
  %v1155 = vmul.f32 %v1143, %v687
  %v1156 = vadd.f32 %v1150, %v1155
  %v1157 = vmul.f32 %v1143, %v690
  %v1158 = vadd.f32 %v1152, %v1157
  %v1159 = vmul.f32 %v1147, %v685
  %v1160 = vadd.f32 %v1154, %v1159
  %v1161 = vmul.f32 %v1147, %v688
  %v1162 = vadd.f32 %v1156, %v1161
  %v1163 = vmul.f32 %v1147, %v691
  %v1164 = vadd.f32 %v1158, %v1163
  %v1165 = vadd.f32 %v665, %v1160
  %v1166 = vxor.u32 %v1165, 2147483648
  %v1167 = vmul.f32 %v1166, 1.442695
  %v1168 = vpow.pop %v1167
  %v1169 = vadd.f32 %v1168, 1.0
  %v1170 = vrcp.pop %v1169
  %v1171 = vmul.f32 %v1169, %v1170
  %v1172 = vsub.f32 1.0, %v1171
  %v1173 = vmul.f32 %v1170, %v1172
  %v1174 = vadd.f32 %v1170, %v1173
  %vm1175 = vweird.f32 %v1169
  %vm1176 = vweird.f32 %v1170
  %vm1177 = vmor %vm1175, %vm1176
  %v1178 = vsel %vm1177, %v1170, %v1174
  %v1179 = vand.u32 2147483647, %v1169
  %vm1180 = vcmp.eq.f32.partialorder %v1179, 8.507059e+37
  %v1181 = vand.u32 %v1169, 2147483648
  %v1182 = vor.u32 1.1754944e-38, %v1181
  %v1183 = vsel %vm1180, %v1182, %v1178
  %v1184 = vmul.f32 1.0, %v1183
  %v1185 = vadd.f32 %v666, %v1162
  %v1186 = vxor.u32 %v1185, 2147483648
  %v1187 = vmul.f32 %v1186, 1.442695
  %v1188 = vpow.pop %v1187
  %v1189 = vadd.f32 %v1188, 1.0
  %v1190 = vrcp.pop %v1189
  %v1191 = vmul.f32 %v1189, %v1190
  %v1192 = vsub.f32 1.0, %v1191
  %v1193 = vmul.f32 %v1190, %v1192
  %v1194 = vadd.f32 %v1190, %v1193
  %vm1195 = vweird.f32 %v1189
  %vm1196 = vweird.f32 %v1190
  %vm1197 = vmor %vm1195, %vm1196
  %v1198 = vsel %vm1197, %v1190, %v1194
  %v1199 = vand.u32 2147483647, %v1189
  %vm1200 = vcmp.eq.f32.partialorder %v1199, 8.507059e+37
  %v1201 = vand.u32 %v1189, 2147483648
  %v1202 = vor.u32 1.1754944e-38, %v1201
  %v1203 = vsel %vm1200, %v1202, %v1198
  %v1204 = vmul.f32 1.0, %v1203
  %v1205 = vmul.f32 %v1184, %v1164
  %v1206 = vadd.f32 %v667, %v1205
  %v1207 = vtanh.pop %v1206
  %v1208 = vsub.f32 1.0, %v1204
  %v1209 = vmul.f32 %v1208, %v1207
  %v1210 = vmul.f32 %v1204, %v1135
  %v1211 = vadd.f32 %v1209, %v1210
  %1213 = vset.pattern.permute.xlu0 0
  %1214 = vperm.xlu0 %1213, %v1211
  %v1215 = vpop.permute.xlu0 %1214
  %1217 = vset.pattern.permute.xlu0 1
  %1218 = vperm.xlu0 %1217, %v1211
  %v1219 = vpop.permute.xlu0 %1218
  %1221 = vset.pattern.permute.xlu0 2
  %1222 = vperm.xlu0 %1221, %v1211
  %v1223 = vpop.permute.xlu0 %1222
  %v1225 = vmul.f32 %v1215, %v683
  %v1226 = vmul.f32 %v1215, %v686
  %v1227 = vmul.f32 %v1215, %v689
  %v1228 = vadd.f32 %v692, %v1227
  %v1229 = vmul.f32 %v1219, %v684
  %v1230 = vadd.f32 %v1225, %v1229
  %v1231 = vmul.f32 %v1219, %v687
  %v1232 = vadd.f32 %v1226, %v1231
  %v1233 = vmul.f32 %v1219, %v690
  %v1234 = vadd.f32 %v1228, %v1233
  %v1235 = vmul.f32 %v1223, %v685
  %v1236 = vadd.f32 %v1230, %v1235
  %v1237 = vmul.f32 %v1223, %v688
  %v1238 = vadd.f32 %v1232, %v1237
  %v1239 = vmul.f32 %v1223, %v691
  %v1240 = vadd.f32 %v1234, %v1239
  %v1241 = vadd.f32 %v680, %v1236
  %v1242 = vxor.u32 %v1241, 2147483648
  %v1243 = vmul.f32 %v1242, 1.442695
  %v1244 = vpow.pop %v1243
  %v1245 = vadd.f32 %v1244, 1.0
  %v1246 = vrcp.pop %v1245
  %v1247 = vmul.f32 %v1245, %v1246
  %v1248 = vsub.f32 1.0, %v1247
  %v1249 = vmul.f32 %v1246, %v1248
  %v1250 = vadd.f32 %v1246, %v1249
  %vm1251 = vweird.f32 %v1245
  %vm1252 = vweird.f32 %v1246
  %vm1253 = vmor %vm1251, %vm1252
  %v1254 = vsel %vm1253, %v1246, %v1250
  %v1255 = vand.u32 2147483647, %v1245
  %vm1256 = vcmp.eq.f32.partialorder %v1255, 8.507059e+37
  %v1257 = vand.u32 %v1245, 2147483648
  %v1258 = vor.u32 1.1754944e-38, %v1257
  %v1259 = vsel %vm1256, %v1258, %v1254
  %v1260 = vmul.f32 1.0, %v1259
  %v1261 = vadd.f32 %v681, %v1238
  %v1262 = vxor.u32 %v1261, 2147483648
  %v1263 = vmul.f32 %v1262, 1.442695
  %v1264 = vpow.pop %v1263
  %v1265 = vadd.f32 %v1264, 1.0
  %v1266 = vrcp.pop %v1265
  %v1267 = vmul.f32 %v1265, %v1266
  %v1268 = vsub.f32 1.0, %v1267
  %v1269 = vmul.f32 %v1266, %v1268
  %v1270 = vadd.f32 %v1266, %v1269
  %vm1271 = vweird.f32 %v1265
  %vm1272 = vweird.f32 %v1266
  %vm1273 = vmor %vm1271, %vm1272
  %v1274 = vsel %vm1273, %v1266, %v1270
  %v1275 = vand.u32 2147483647, %v1265
  %vm1276 = vcmp.eq.f32.partialorder %v1275, 8.507059e+37
  %v1277 = vand.u32 %v1265, 2147483648
  %v1278 = vor.u32 1.1754944e-38, %v1277
  %v1279 = vsel %vm1276, %v1278, %v1274
  %v1280 = vmul.f32 1.0, %v1279
  %v1281 = vmul.f32 %v1260, %v1240
  %v1282 = vadd.f32 %v682, %v1281
  %v1283 = vtanh.pop %v1282
  %v1284 = vsub.f32 1.0, %v1280
  %v1285 = vmul.f32 %v1284, %v1283
  %v1286 = vmul.f32 %v1280, %v1211
  %v1287 = vadd.f32 %v1285, %v1286
  %v1288 = vrot.slane %v831, 7
  %v1290 = vrot.slane %v907, 6
  %v1292 = vrot.slane %v983, 5
  %v1294 = vrot.slane %v1059, 4
  %v1296 = vrot.slane %v1135, 3
  %v1298 = vrot.slane %v1211, 2
  %v1301 = vrot.slane %v1287, 1
  %v1303 = vsel %vm577, %v755, %v1288
  %vm1304 = vcmask 1041408
  %v1305 = vsel %vm1304, %v1303, %v1290
  %vm1306 = vcmask 1042432
  %v1307 = vsel %vm1306, %v1305, %v1292
  %v1308 = vsel %vm27, %v1307, %v1294
  %vm1309 = vcmask 1044480
  %v1310 = vsel %vm1309, %v1308, %v1296
  %vm1311 = vcmask 1045504
  %v1312 = vsel %vm1311, %v1310, %v1298
  %vm1313 = vcmask 1046528
  %v1314 = vsel %vm1313, %v1312, %v1301
  %v1315 = vrot.slane %v755, 1
  %v1317 = vrot.slane %v907, 7
  %v1319 = vrot.slane %v983, 6
  %v1321 = vrot.slane %v1059, 5
  %v1323 = vrot.slane %v1135, 4
  %v1325 = vrot.slane %v1211, 3
  %v1327 = vrot.slane %v1287, 2
  %v1329 = vsel %vm577, %v1315, %v831
  %v1330 = vsel %vm1304, %v1329, %v1317
  %v1331 = vsel %vm1306, %v1330, %v1319
  %v1332 = vsel %vm27, %v1331, %v1321
  %v1333 = vsel %vm1309, %v1332, %v1323
  %v1334 = vsel %vm1311, %v1333, %v1325
  %v1335 = vsel %vm1313, %v1334, %v1327
  %v1336 = vlaneseq
  %v1337 = vand.u32 %v1336, 127
  %vm1338 = vcmp.eq.s32.totalorder %v1337, 0
  %v1339 = vxor.u32 %v1314, 2147483648
  %v1340 = vxor.u32 %v1335, 2147483648
  %v1341 = vmul.f32 %v1339, 1.442695
  %v1342 = vpow.pop %v1341
  %v1343 = vmul.f32 %v1340, 1.442695
  %v1344 = vpow.pop %v1343
  %v1345 = vadd.f32 %v1342, 1.0
  %v1346 = vadd.f32 %v1344, 1.0
  %v1347 = vrcp.pop %v1345
  %v1348 = vmul.f32 %v1345, %v1347
  %v1349 = vsub.f32 1.0, %v1348
  %v1350 = vmul.f32 %v1347, %v1349
  %v1351 = vadd.f32 %v1347, %v1350
  %vm1352 = vweird.f32 %v1345
  %vm1353 = vweird.f32 %v1347
  %vm1354 = vmor %vm1352, %vm1353
  %v1355 = vsel %vm1354, %v1347, %v1351
  %v1356 = vand.u32 2147483647, %v1345
  %vm1357 = vcmp.eq.f32.partialorder %v1356, 8.507059e+37
  %v1358 = vand.u32 %v1345, 2147483648
  %v1359 = vor.u32 1.1754944e-38, %v1358
  %v1360 = vsel %vm1357, %v1359, %v1355
  %v1361 = vmul.f32 1.0, %v1360
  %v1362 = vrcp.pop %v1346
  %v1363 = vmul.f32 %v1346, %v1362
  %v1364 = vsub.f32 1.0, %v1363
  %v1365 = vmul.f32 %v1362, %v1364
  %v1366 = vadd.f32 %v1362, %v1365
  %vm1367 = vweird.f32 %v1346
  %vm1368 = vweird.f32 %v1362
  %vm1369 = vmor %vm1367, %vm1368
  %v1370 = vsel %vm1369, %v1362, %v1366
  %v1371 = vand.u32 2147483647, %v1346
  %vm1372 = vcmp.eq.f32.partialorder %v1371, 8.507059e+37
  %v1373 = vand.u32 %v1346, 2147483648
  %v1374 = vor.u32 1.1754944e-38, %v1373
  %v1375 = vsel %vm1372, %v1374, %v1370
  %v1376 = vmul.f32 1.0, %v1375
  %v1377 = vmul.f32 %v1314, 1.442695
  %v1378 = vpow.pop %v1377
  %v1379 = vmul.f32 %v1335, 1.442695
  %v1380 = vpow.pop %v1379
  %v1381 = vsel %vm1338, %v1361, %v1378
  %v1382 = vsel %vm1338, %v1376, %v1380
  %vm1383 = vcmask 23552
  %1384 = vst.msk [vmem:[%s2] sm:$0xff] %vm1383, %v1381
  %1385 = vst.msk [vmem:[%s2 + $0x8] sm:$0xff] %vm1383, %v1382
  // Predicated region
  $region10: #{gru_bgmm_forward.1} parent=0 // pred_check
    _
  $region11: #{gru_bgmm_forward.1} parent=0 // pred_check_branch
    %1387 = sbr.rel (0) target = $region13
  $region12: #{gru_bgmm_forward.1} parent=0 // pred_region
    _
  $region13: #{gru_bgmm_forward.1} parent=0 // pred_fallthru
    _
  // Predicated region
  $region14: #{gru_bgmm_forward.1} parent=0 // pred_check
    _
  $region15: #{gru_bgmm_forward.1} parent=0 // pred_check_branch
    %1389 = sbr.rel (0) target = $region17
  $region16: #{gru_bgmm_forward.1} parent=0 // pred_region
    _
  $region17: #{gru_bgmm_forward.1} parent=0 // pred_fallthru
    _

</llo_original>
